<compile_context>
chip_gen: v5e
topology: v5e:2x2
jax: 0.10.0
libtpu: 0.0.40
codegen_flags: <defaults>
</compile_context>

<pallas_src>
import functools

import jax
import jax.numpy as jnp
from jax.experimental import pallas as pl
from jax.experimental.pallas import tpu as pltpu


def _round_up(x, m):
    return (x + m - 1) // m * m


# ---------------------------------------------------------------------------
# Pass 1: conv-as-matmul (tiled over M and K) + per-M-block BatchNorm stats
# ---------------------------------------------------------------------------
def conv_stats_kernel(x_ref, w_ref, y_ref, psum_ref, pssq_ref, acc_ref, *,
                      tk, grid_k, w_resident):
    kk = pl.program_id(1)

    @pl.when(kk == 0)
    def _():
        acc_ref[...] = jnp.zeros_like(acc_ref)

    if w_resident and grid_k > 1:
        # Whole weight matrix is VMEM-resident (constant index_map); slice this K tile.
        w = w_ref[pl.ds(pl.multiple_of(kk * tk, tk), tk), :]
    else:
        w = w_ref[...]
    acc_ref[...] += jnp.dot(x_ref[...], w, preferred_element_type=jnp.float32)

    @pl.when(kk == grid_k - 1)
    def _():
        y = acc_ref[...]                                    # (tm, c_pad) f32
        y_ref[...] = y.astype(y_ref.dtype)                  # bf16 intermediate
        # Per-block channel sums / sums-of-squares (f32), replicated over 8 sublanes
        # so the output block is (8, 128)-aligned; host reduces over blocks, which
        # keeps the M grid axis parallelizable (no shared stats accumulator).
        s = jnp.sum(y, axis=0, keepdims=True)               # (1, c_pad)
        q = jnp.sum(y * y, axis=0, keepdims=True)           # (1, c_pad)
        psum_ref[...] = jnp.broadcast_to(s[None], psum_ref.shape)
        pssq_ref[...] = jnp.broadcast_to(q[None], pssq_ref.shape)


# ---------------------------------------------------------------------------
# Pass 2: fused BatchNorm affine + ReLU (pure streaming, bf16 writeback)
# ---------------------------------------------------------------------------
def bn_relu_kernel(y_ref, scale_ref, shift_ref, o_ref):
    y = y_ref[...].astype(jnp.float32)
    o_ref[...] = jnp.maximum(y * scale_ref[...] + shift_ref[...], 0.0).astype(o_ref.dtype)


# ---------------------------------------------------------------------------
# Host-side im2col (bf16) : NCHW -> [M, K] with (c_in, kh, kw) ordering on K
# ---------------------------------------------------------------------------
def _im2col(x, kh, kw, stride, padding):
    n, c, h, w = x.shape
    xp = jnp.pad(x, ((0, 0), (0, 0), (padding, padding), (padding, padding)))
    h_out = (h + 2 * padding - kh) // stride + 1
    w_out = (w + 2 * padding - kw) // stride + 1
    cols = []
    for ih in range(kh):
        for iw in range(kw):
            cols.append(
                xp[:, :, ih:ih + h_out * stride:stride, iw:iw + w_out * stride:stride]
            )  # (N, C, H_out, W_out)
    patches = jnp.stack(cols, axis=2).transpose(0, 3, 4, 1, 2)  # (N,Ho,Wo,C,KH*KW)
    return patches.reshape(n * h_out * w_out, c * kh * kw), h_out, w_out


# ---------------------------------------------------------------------------
# Wrapper
# ---------------------------------------------------------------------------
@functools.partial(jax.jit, static_argnames=("stride", "padding", "eps", "tm"))
def conv2d_bn_relu(x, weight, gamma, beta, *, stride=1, padding=0, eps=1e-5, tm=1024):
    """x: (N, C_in, H, W); weight: (C_out, C_in, KH, KW). Returns (N, C_out, Ho, Wo) f32."""
    n, c_in, h, w = x.shape
    c_out, _, kh, kw = weight.shape

    # bf16 MXU inputs; halves HBM traffic for activations + weights.
    # TODO(synk): implicit GEMM would avoid materializing this KH*KW-inflated patch
    # tensor in HBM entirely (largest remaining HBM-traffic item).
    x_cols, h_out, w_out = _im2col(x.astype(jnp.bfloat16), kh, kw, stride, padding)
    w_mat = weight.reshape(c_out, c_in * kh * kw).T.astype(jnp.bfloat16)  # (K, C_out)

    m, k = x_cols.shape

    # --- tiling choices -----------------------------------------------------
    # M tile: as large as reasonable; tail M handled by zero padding (padded rows
    # contribute 0 to the BN sums and are sliced away).
    tm = max(256, _round_up(tm, 256))
    tm = min(tm, _round_up(m, 256))
    m_pad = _round_up(m, tm)
    grid_m = m_pad // tm

    # K tiling: do NOT over-pad small K to a 128-lane tile (that alone inflated
    # x_cols HBM reads ~3.5x for shallow inputs). Small K -> one full-K tile;
    # large K -> 256-deep tiles.
    if k <= 1024:
        tk = k_pad = _round_up(k, 16)
    else:
        tk = 256
        k_pad = _round_up(k, tk)
    grid_k = k_pad // tk

    c_pad = _round_up(c_out, 128)            # lane-dense output tile

    # Keep the whole (K, C_out) weight resident in VMEM when it fits (typical conv
    # layers: a few hundred KiB..MiB) -> loaded once instead of once per M block.
    w_resident = (2 * k_pad * c_pad * 2) <= (12 * 1024 * 1024)

    x_cols = jnp.pad(x_cols, ((0, m_pad - m), (0, k_pad - k)))
    w_mat = jnp.pad(w_mat, ((0, k_pad - k), (0, c_pad - c_out)))

    vmem_limit = 40 * 1024 * 1024            # fits v7x's 64 MiB VMEM with headroom

    w_spec = (pl.BlockSpec((k_pad, c_pad), lambda i, kk: (0, 0)) if w_resident
              else pl.BlockSpec((tk, c_pad), lambda i, kk: (kk, 0)))

    kernel1 = functools.partial(conv_stats_kernel, tk=tk, grid_k=grid_k,
                                w_resident=w_resident)

    # ---- pass 1: GEMM + per-block channel sums (training-mode BN stats) ----
    y_flat, psum, pssq = pl.pallas_call(
        kernel1,
        out_shape=(
            jax.ShapeDtypeStruct((m_pad, c_pad), jnp.bfloat16),
            jax.ShapeDtypeStruct((grid_m, 8, c_pad), jnp.float32),
            jax.ShapeDtypeStruct((grid_m, 8, c_pad), jnp.float32),
        ),
        grid_spec=pltpu.PrefetchScalarGridSpec(
            num_scalar_prefetch=0,
            grid=(grid_m, grid_k),
            in_specs=[
                pl.BlockSpec((tm, tk), lambda i, kk: (i, kk)),
                w_spec,
            ],
            out_specs=(
                pl.BlockSpec((tm, c_pad), lambda i, kk: (i, 0)),
                pl.BlockSpec((1, 8, c_pad), lambda i, kk: (i, 0, 0)),
                pl.BlockSpec((1, 8, c_pad), lambda i, kk: (i, 0, 0)),
            ),
            scratch_shapes=[pltpu.VMEM((tm, c_pad), jnp.float32)],
        ),
        compiler_params=pltpu.CompilerParams(
            # TODO(synk): on v7x, try pltpu.CORE_PARALLEL on axis 0 (per-block stats
            # outputs already make it safe); "parallel" kept as the portable default.
            dimension_semantics=("parallel", "arbitrary"),
            vmem_limit_bytes=vmem_limit,
        ),
    )(x_cols, w_mat)

    # BatchNorm2d training-mode stats: biased variance over (N, H, W).
    # NOTE: E[y^2]-E[y]^2 in f32 can cancel for very large M; clamped >= 0.
    # TODO(synk): Welford-style combine of the per-block partials for huge layers.
    ch_sum = jnp.sum(psum[:, 0, :], axis=0)                  # (c_pad,)
    ch_ssq = jnp.sum(pssq[:, 0, :], axis=0)                  # (c_pad,)
    count = jnp.float32(m)                                   # real (unpadded) M
    mean = ch_sum / count
    var = jnp.maximum(ch_ssq / count - mean * mean, 0.0)
    gamma_p = jnp.pad(gamma.astype(jnp.float32), (0, c_pad - c_out))
    beta_p = jnp.pad(beta.astype(jnp.float32), (0, c_pad - c_out))
    inv = jax.lax.rsqrt(var + eps)
    scale = (gamma_p * inv).reshape(1, c_pad)
    shift = (beta_p - mean * gamma_p * inv).reshape(1, c_pad)

    # ---- pass 2: fused BN affine + ReLU (streaming, lane-dense, bf16 out) ----
    # No accumulator here -> merge pass-1 M blocks into bigger streaming tiles.
    tm2 = tm
    for f in (8, 4, 2):
        if grid_m % f == 0 and tm * f * c_pad * 8 <= 16 * 1024 * 1024:
            tm2 = tm * f
            break
    grid_m2 = m_pad // tm2

    out_flat = pl.pallas_call(
        bn_relu_kernel,
        out_shape=jax.ShapeDtypeStruct((m_pad, c_pad), jnp.bfloat16),
        grid_spec=pltpu.PrefetchScalarGridSpec(
            num_scalar_prefetch=0,
            grid=(grid_m2,),
            in_specs=[
                pl.BlockSpec((tm2, c_pad), lambda i: (i, 0)),
                pl.BlockSpec((1, c_pad), lambda i: (0, 0)),
                pl.BlockSpec((1, c_pad), lambda i: (0, 0)),
            ],
            out_specs=pl.BlockSpec((tm2, c_pad), lambda i: (i, 0)),
        ),
        compiler_params=pltpu.CompilerParams(
            dimension_semantics=("parallel",),
            vmem_limit_bytes=vmem_limit,
        ),
    )(y_flat, scale, shift)

    # Drop padding; f32 cast fused into the final relayout. (M, C_out) -> NHWC -> NCHW.
    # TODO(synk): the NCHW transpose exists only for PyTorch-layout parity; a real
    # pipeline should stay NHWC and fold the relayout into the consumer.
    out = out_flat[:m, :c_out].astype(jnp.float32).reshape(n, h_out, w_out, c_out)
    return out.transpose(0, 3, 1, 2)


# ---------------------------------------------------------------------------
# Reference (pure JAX, f32 math on bf16-rounded inputs to match MXU precision)
# ---------------------------------------------------------------------------
def _reference(x, weight, gamma, beta, *, stride, padding, eps=1e-5):
    xb = x.astype(jnp.bfloat16).astype(jnp.float32)
    wb = weight.astype(jnp.bfloat16).astype(jnp.float32)
    y = jax.lax.conv_general_dilated(
        xb, wb, window_strides=(stride, stride),
        padding=((padding, padding), (padding, padding)),
        dimension_numbers=("NCHW", "OIHW", "NCHW"))
    mean = jnp.mean(y, axis=(0, 2, 3), keepdims=True)
    var = jnp.var(y, axis=(0, 2, 3), keepdims=True)
    yn = (y - mean) * jax.lax.rsqrt(var + eps)
    yn = yn * gamma.reshape(1, -1, 1, 1) + beta.reshape(1, -1, 1, 1)
    return jnp.maximum(yn, 0.0)


if __name__ == "__main__":
    # Conv2dReLU(in_channels=4, out_channels=8, kernel_size=3, padding=1,
    #            stride=1, use_batchnorm=True) -> Conv (no bias) + BN + ReLU
    N, C_in, H, W = 2, 4, 16, 16
    C_out, KH, KW = 8, 3, 3
    stride, padding = 1, 1

    key = jax.random.PRNGKey(0)
    kx, kw_, kg, kb = jax.random.split(key, 4)
    x = jax.random.normal(kx, (N, C_in, H, W), dtype=jnp.float32)
    weight = jax.random.normal(kw_, (C_out, C_in, KH, KW), dtype=jnp.float32) * 0.1
    gamma = 1.0 + 0.1 * jax.random.normal(kg, (C_out,), dtype=jnp.float32)
    beta = 0.1 * jax.random.normal(kb, (C_out,), dtype=jnp.float32)

    # tm=256 exercises multiple M blocks (M = 2*16*16 = 512), the per-block
    # partial-sum reduction path, and the merged pass-2 tile (tm2 = 512).
    out = conv2d_bn_relu(x, weight, gamma, beta, stride=stride, padding=padding, tm=256)
    out = jax.block_until_ready(out)

    ref = _reference(x, weight, gamma, beta, stride=stride, padding=padding)
    assert out.shape == (N, C_out, H, W)
    # Tolerance accounts for the bf16 y intermediate and the bf16 pass-2 output.
    assert jnp.allclose(out, ref, atol=3e-2, rtol=5e-2), "mismatch vs reference"

    print("KERNEL_OK")
</pallas_src>

<mosaic_0001>
module attributes {stable_mosaic.version = 11 : i64} {
  func.func @conv_stats_kernel(%arg0: i32, %arg1: i32, %arg2: memref<256x48xbf16, #tpu.memory_space<vmem>>, %arg3: memref<48x128xbf16, #tpu.memory_space<vmem>>, %arg4: memref<256x128xbf16, #tpu.memory_space<vmem>>, %arg5: memref<1x8x128xf32, #tpu.memory_space<vmem>>, %arg6: memref<1x8x128xf32, #tpu.memory_space<vmem>>, %arg7: memref<256x128xf32, #tpu.memory_space<vmem>>) attributes {dimension_semantics = [#tpu.dimension_semantics<parallel>, #tpu.dimension_semantics<arbitrary>], iteration_bounds = array<i64: 2, 1>, scalar_prefetch = 0 : i64, scratch_operands = 1 : i64, tpu.core_type = #tpu.core_type<tc>, window_params = [{transform_indices = @transform_0, window_bounds = array<i64: 256, 48>}, {pipeline_mode = #tpu.pipeline_mode<synchronous>, transform_indices = @transform_1, window_bounds = array<i64: 48, 128>}, {transform_indices = @transform_2, window_bounds = array<i64: 256, 128>}, {transform_indices = @transform_3, window_bounds = array<i64: 1, 8, 128>}, {transform_indices = @transform_4, window_bounds = array<i64: 1, 8, 128>}]} {
    %c0_i32 = arith.constant 0 : i32
    %0 = arith.cmpi eq, %arg1, %c0_i32 : i32
    %1 = arith.extui %0 : i1 to i32
    %c0_i32_0 = arith.constant 0 : i32
    %2 = arith.cmpi ne, %1, %c0_i32_0 : i32
    scf.if %2 {
      %cst_10 = arith.constant 0.000000e+00 : f32
      %12 = vector.broadcast %cst_10 : f32 to vector<256x128xf32>
      %c0_11 = arith.constant 0 : index
      %c0_12 = arith.constant 0 : index
      %13 = vector.load %arg7[%c0_11, %c0_12] : memref<256x128xf32, #tpu.memory_space<vmem>>, vector<256x128xf32>
      tpu.vector_store %arg7[%c0_11, %c0_12], %12 {strides = array<i32>} : memref<256x128xf32, #tpu.memory_space<vmem>>, vector<256x128xf32>,
    } else {
    }
    %c0 = arith.constant 0 : index
    %c0_1 = arith.constant 0 : index
    %3 = vector.load %arg3[%c0, %c0_1] : memref<48x128xbf16, #tpu.memory_space<vmem>>, vector<48x128xbf16>
    %c0_2 = arith.constant 0 : index
    %c0_3 = arith.constant 0 : index
    %4 = vector.load %arg7[%c0_2, %c0_3] : memref<256x128xf32, #tpu.memory_space<vmem>>, vector<256x128xf32>
    %c0_4 = arith.constant 0 : index
    %c0_5 = arith.constant 0 : index
    %5 = vector.load %arg2[%c0_4, %c0_5] : memref<256x48xbf16, #tpu.memory_space<vmem>>, vector<256x48xbf16>
    %cst = arith.constant dense<0.000000e+00> : vector<256x128xf32>
    %6 = tpu.matmul %5, %3, %cst {dimension_numbers = #tpu.dot_dimension_numbers<[1], [0], [0], [1], [0, 0, 1, 1], [], []>} : vector<256x48xbf16>, vector<48x128xbf16>, vector<256x128xf32> -> vector<256x128xf32>
    %7 = arith.addf %4, %6 : vector<256x128xf32>
    %c0_6 = arith.constant 0 : index
    %c0_7 = arith.constant 0 : index
    %8 = vector.load %arg7[%c0_6, %c0_7] : memref<256x128xf32, #tpu.memory_space<vmem>>, vector<256x128xf32>
    tpu.vector_store %arg7[%c0_6, %c0_7], %7 {strides = array<i32>} : memref<256x128xf32, #tpu.memory_space<vmem>>, vector<256x128xf32>,
    %c0_i32_8 = arith.constant 0 : i32
    %9 = arith.cmpi eq, %arg1, %c0_i32_8 : i32
    %10 = arith.extui %9 : i1 to i32
    %c0_i32_9 = arith.constant 0 : i32
    %11 = arith.cmpi ne, %10, %c0_i32_9 : i32
    scf.if %11 {
      %c0_10 = arith.constant 0 : index
      %c0_11 = arith.constant 0 : index
      %12 = vector.load %arg7[%c0_10, %c0_11] : memref<256x128xf32, #tpu.memory_space<vmem>>, vector<256x128xf32>
      %13 = arith.truncf %12 : vector<256x128xf32> to vector<256x128xbf16>
      %c0_12 = arith.constant 0 : index
      %c0_13 = arith.constant 0 : index
      %14 = vector.load %arg4[%c0_12, %c0_13] : memref<256x128xbf16, #tpu.memory_space<vmem>>, vector<256x128xbf16>
      tpu.vector_store %arg4[%c0_12, %c0_13], %13 {strides = array<i32>} : memref<256x128xbf16, #tpu.memory_space<vmem>>, vector<256x128xbf16>,
      %cst_14 = arith.constant dense<0.000000e+00> : vector<128xf32>
      %15 = vector.multi_reduction <add>, %12, %cst_14 [0] : vector<256x128xf32> to vector<128xf32>
      %16 = vector.shape_cast %15 : vector<128xf32> to vector<1x128xf32>
      %17 = arith.mulf %12, %12 : vector<256x128xf32>
      %cst_15 = arith.constant dense<0.000000e+00> : vector<128xf32>
      %18 = vector.multi_reduction <add>, %17, %cst_15 [0] : vector<256x128xf32> to vector<128xf32>
      %19 = vector.shape_cast %18 : vector<128xf32> to vector<1x128xf32>
      %20 = vector.shape_cast %16 : vector<1x128xf32> to vector<1x1x128xf32>
      %21 = vector.shape_cast %20 : vector<1x1x128xf32> to vector<1x1x128xf32>
      %22 = vector.broadcast %21 : vector<1x1x128xf32> to vector<1x8x128xf32>
      %c0_16 = arith.constant 0 : index
      %c0_17 = arith.constant 0 : index
      %c0_18 = arith.constant 0 : index
      %23 = vector.load %arg5[%c0_16, %c0_17, %c0_18] : memref<1x8x128xf32, #tpu.memory_space<vmem>>, vector<1x8x128xf32>
      tpu.vector_store %arg5[%c0_16, %c0_17, %c0_18], %22 {strides = array<i32>} : memref<1x8x128xf32, #tpu.memory_space<vmem>>, vector<1x8x128xf32>,
      %24 = vector.shape_cast %19 : vector<1x128xf32> to vector<1x1x128xf32>
      %25 = vector.shape_cast %24 : vector<1x1x128xf32> to vector<1x1x128xf32>
      %26 = vector.broadcast %25 : vector<1x1x128xf32> to vector<1x8x128xf32>
      %c0_19 = arith.constant 0 : index
      %c0_20 = arith.constant 0 : index
      %c0_21 = arith.constant 0 : index
      %27 = vector.load %arg6[%c0_19, %c0_20, %c0_21] : memref<1x8x128xf32, #tpu.memory_space<vmem>>, vector<1x8x128xf32>
      tpu.vector_store %arg6[%c0_19, %c0_20, %c0_21], %26 {strides = array<i32>} : memref<1x8x128xf32, #tpu.memory_space<vmem>>, vector<1x8x128xf32>,
    } else {
    }
    return
  }
  func.func @transform_0(%arg0: i32, %arg1: i32) -> (i32, i32) {
    %c0_i32 = arith.constant 0 : i32
    return %arg0, %arg1 : i32, i32
  }
  func.func @transform_1(%arg0: i32, %arg1: i32) -> (i32, i32) {
    %c0_i32 = arith.constant 0 : i32
    %c0_i32_0 = arith.constant 0 : i32
    %c0_i32_1 = arith.constant 0 : i32
    return %c0_i32, %c0_i32_0 : i32, i32
  }
  func.func @transform_2(%arg0: i32, %arg1: i32) -> (i32, i32) {
    %c0_i32 = arith.constant 0 : i32
    %c0_i32_0 = arith.constant 0 : i32
    return %arg0, %c0_i32 : i32, i32
  }
  func.func @transform_3(%arg0: i32, %arg1: i32) -> (i32, i32, i32) {
    %c0_i32 = arith.constant 0 : i32
    %c0_i32_0 = arith.constant 0 : i32
    %c0_i32_1 = arith.constant 0 : i32
    return %arg0, %c0_i32, %c0_i32_0 : i32, i32, i32
  }
  func.func @transform_4(%arg0: i32, %arg1: i32) -> (i32, i32, i32) {
    %c0_i32 = arith.constant 0 : i32
    %c0_i32_0 = arith.constant 0 : i32
    %c0_i32_1 = arith.constant 0 : i32
    return %arg0, %c0_i32, %c0_i32_0 : i32, i32, i32
  }
}

module attributes {stable_mosaic.version = 11 : i64} {
  func.func @bn_relu_kernel(%arg0: i32, %arg1: memref<512x128xbf16, #tpu.memory_space<vmem>>, %arg2: memref<1x128xf32, #tpu.memory_space<vmem>>, %arg3: memref<1x128xf32, #tpu.memory_space<vmem>>, %arg4: memref<512x128xbf16, #tpu.memory_space<vmem>>) attributes {dimension_semantics = [#tpu.dimension_semantics<parallel>], iteration_bounds = array<i64: 1>, scalar_prefetch = 0 : i64, scratch_operands = 0 : i64, tpu.core_type = #tpu.core_type<tc>, window_params = [{transform_indices = @transform_0, window_bounds = array<i64: 512, 128>}, {pipeline_mode = #tpu.pipeline_mode<synchronous>, transform_indices = @transform_1, window_bounds = array<i64: 1, 128>}, {pipeline_mode = #tpu.pipeline_mode<synchronous>, transform_indices = @transform_2, window_bounds = array<i64: 1, 128>}, {transform_indices = @transform_3, window_bounds = array<i64: 512, 128>}]} {
    %c0 = arith.constant 0 : index
    %c0_0 = arith.constant 0 : index
    %0 = vector.load %arg1[%c0, %c0_0] : memref<512x128xbf16, #tpu.memory_space<vmem>>, vector<512x128xbf16>
    %1 = arith.extf %0 : vector<512x128xbf16> to vector<512x128xf32>
    %c0_1 = arith.constant 0 : index
    %c0_2 = arith.constant 0 : index
    %2 = vector.load %arg2[%c0_1, %c0_2] : memref<1x128xf32, #tpu.memory_space<vmem>>, vector<1x128xf32>
    %3 = vector.broadcast %2 : vector<1x128xf32> to vector<512x128xf32>
    %4 = arith.mulf %1, %3 : vector<512x128xf32>
    %c0_3 = arith.constant 0 : index
    %c0_4 = arith.constant 0 : index
    %5 = vector.load %arg3[%c0_3, %c0_4] : memref<1x128xf32, #tpu.memory_space<vmem>>, vector<1x128xf32>
    %6 = vector.broadcast %5 : vector<1x128xf32> to vector<512x128xf32>
    %7 = arith.addf %4, %6 : vector<512x128xf32>
    %cst = arith.constant 0.000000e+00 : f32
    %8 = vector.broadcast %cst : f32 to vector<512x128xf32>
    %9 = arith.maximumf %7, %8 : vector<512x128xf32>
    %10 = arith.truncf %9 : vector<512x128xf32> to vector<512x128xbf16>
    %c0_5 = arith.constant 0 : index
    %c0_6 = arith.constant 0 : index
    %11 = vector.load %arg4[%c0_5, %c0_6] : memref<512x128xbf16, #tpu.memory_space<vmem>>, vector<512x128xbf16>
    tpu.vector_store %arg4[%c0_5, %c0_6], %10 {strides = array<i32>} : memref<512x128xbf16, #tpu.memory_space<vmem>>, vector<512x128xbf16>,
    return
  }
  func.func @transform_0(%arg0: i32) -> (i32, i32) {
    %c0_i32 = arith.constant 0 : i32
    %c0_i32_0 = arith.constant 0 : i32
    return %arg0, %c0_i32 : i32, i32
  }
  func.func @transform_1(%arg0: i32) -> (i32, i32) {
    %c0_i32 = arith.constant 0 : i32
    %c0_i32_0 = arith.constant 0 : i32
    %c0_i32_1 = arith.constant 0 : i32
    return %c0_i32, %c0_i32_0 : i32, i32
  }
  func.func @transform_2(%arg0: i32) -> (i32, i32) {
    %c0_i32 = arith.constant 0 : i32
    %c0_i32_0 = arith.constant 0 : i32
    %c0_i32_1 = arith.constant 0 : i32
    return %c0_i32, %c0_i32_0 : i32, i32
  }
  func.func @transform_3(%arg0: i32) -> (i32, i32) {
    %c0_i32 = arith.constant 0 : i32
    %c0_i32_0 = arith.constant 0 : i32
    return %arg0, %c0_i32 : i32, i32
  }
}

</mosaic_0001>

<llo_original>
// kernel: conv2d_bn_relu.3
$region0: #{conv2d_bn_relu.3}
  #allocation0 [shape = 'u32[]', space=smem, size = 0x4, offset = 0x4, fixed_abs, tag = 'smem constant byte address 0x4 - core index']
  #allocation1 [shape = 'u32[72,128]{1,0:T(1,128)}', space=vmem, size = 0x9000, scoped, tag = 'internal scratch']
  %s0 = inlined_call_operand.vmem [shape: bf16[512,128], index: 0, kind: input, shape index: {}]
  %s1 = inlined_call_operand.vmem [shape: f32[1,128], index: 1, kind: input, shape index: {}]
  %s2 = inlined_call_operand.vmem [shape: f32[1,128], index: 2, kind: input, shape index: {}]
  %s3 = inlined_call_operand.vmem [shape: bf16[512,128], index: 3, kind: output, shape index: {}]
  %s4 = sld [smem:[#allocation0]]
  $region22: #{conv2d_bn_relu.3} parent=0
    _
  %s6 = ssub.s32 1, %s4
  %s7 = scalar_select 0, %s6, %s4
  // Predicated region
  $region2: #{conv2d_bn_relu.3} parent=0 // pred_check
    _
  $region3: #{conv2d_bn_relu.3} parent=0 // pred_check_branch
    %9 = sbr.rel (0) target = $region5
  $region4: #{conv2d_bn_relu.3} parent=0 // pred_region
    _
  $region5: #{conv2d_bn_relu.3} parent=0 // pred_fallthru
    _
  // Predicated region
  $region6: #{conv2d_bn_relu.3} parent=0 // pred_check
    _
  $region7: #{conv2d_bn_relu.3} parent=0 // pred_check_branch
    %11 = sbr.rel (0) target = $region9
  $region8: #{conv2d_bn_relu.3} parent=0 // pred_region
    _
  $region9: #{conv2d_bn_relu.3} parent=0 // pred_fallthru
    _
  // Predicated region
  $region10: #{conv2d_bn_relu.3} parent=0 // pred_check
    _
  $region11: #{conv2d_bn_relu.3} parent=0 // pred_check_branch
    %13 = sbr.rel (0) target = $region13
  $region12: #{conv2d_bn_relu.3} parent=0 // pred_region
    _
  $region13: #{conv2d_bn_relu.3} parent=0 // pred_fallthru
    _
  %v14 = vld [vmem:[%s0] sm:$0xf]
  %v15 = vld [vmem:[%s0 + $0x4] sm:$0xf]
  %v16 = vld [vmem:[%s0 + $0x8] sm:$0xf]
  %v17 = vld [vmem:[%s0 + $0xc] sm:$0xf]
  %v18 = vld [vmem:[%s0 + $0x10] sm:$0xf]
  %v19 = vld [vmem:[%s0 + $0x14] sm:$0xf]
  %v20 = vld [vmem:[%s0 + $0x18] sm:$0xf]
  %v21 = vld [vmem:[%s0 + $0x1c] sm:$0xf]
  %v22 = vld [vmem:[%s0 + $0x20] sm:$0xf]
  %v23 = vld [vmem:[%s0 + $0x24] sm:$0xf]
  %v24 = vld [vmem:[%s0 + $0x28] sm:$0xf]
  %v25 = vld [vmem:[%s0 + $0x2c] sm:$0xf]
  %v26 = vld [vmem:[%s0 + $0x30] sm:$0xf]
  %v27 = vld [vmem:[%s0 + $0x34] sm:$0xf]
  %v28 = vld [vmem:[%s0 + $0x38] sm:$0xf]
  %v29 = vld [vmem:[%s0 + $0x3c] sm:$0xf]
  %v30 = vld [vmem:[%s0 + $0x40] sm:$0xf]
  %v31 = vld [vmem:[%s0 + $0x44] sm:$0xf]
  %v32 = vld [vmem:[%s0 + $0x48] sm:$0xf]
  %v33 = vld [vmem:[%s0 + $0x4c] sm:$0xf]
  %v34 = vld [vmem:[%s0 + $0x50] sm:$0xf]
  %v35 = vld [vmem:[%s0 + $0x54] sm:$0xf]
  %v36 = vld [vmem:[%s0 + $0x58] sm:$0xf]
  %v37 = vld [vmem:[%s0 + $0x5c] sm:$0xf]
  %v38 = vld [vmem:[%s0 + $0x60] sm:$0xf]
  %v39 = vld [vmem:[%s0 + $0x64] sm:$0xf]
  %v40 = vld [vmem:[%s0 + $0x68] sm:$0xf]
  %v41 = vld [vmem:[%s0 + $0x6c] sm:$0xf]
  %v42 = vld [vmem:[%s0 + $0x70] sm:$0xf]
  %v43 = vld [vmem:[%s0 + $0x74] sm:$0xf]
  %v44 = vld [vmem:[%s0 + $0x78] sm:$0xf]
  %v45 = vld [vmem:[%s0 + $0x7c] sm:$0xf]
  %v46 = vld [vmem:[%s0 + $0x80] sm:$0xf]
  %v47 = vld [vmem:[%s0 + $0x84] sm:$0xf]
  %v48 = vld [vmem:[%s0 + $0x88] sm:$0xf]
  %v49 = vld [vmem:[%s0 + $0x8c] sm:$0xf]
  %v50 = vld [vmem:[%s0 + $0x90] sm:$0xf]
  %v51 = vld [vmem:[%s0 + $0x94] sm:$0xf]
  %v52 = vld [vmem:[%s0 + $0x98] sm:$0xf]
  %v53 = vld [vmem:[%s0 + $0x9c] sm:$0xf]
  %v54 = vld [vmem:[%s0 + $0xa0] sm:$0xf]
  %v55 = vld [vmem:[%s0 + $0xa4] sm:$0xf]
  %v56 = vld [vmem:[%s0 + $0xa8] sm:$0xf]
  %v57 = vld [vmem:[%s0 + $0xac] sm:$0xf]
  %v58 = vld [vmem:[%s0 + $0xb0] sm:$0xf]
  %v59 = vld [vmem:[%s0 + $0xb4] sm:$0xf]
  %v60 = vld [vmem:[%s0 + $0xb8] sm:$0xf]
  %v61 = vld [vmem:[%s0 + $0xbc] sm:$0xf]
  %v62 = vld [vmem:[%s0 + $0xc0] sm:$0xf]
  %v63 = vld [vmem:[%s0 + $0xc4] sm:$0xf]
  %v64 = vld [vmem:[%s0 + $0xc8] sm:$0xf]
  %v65 = vld [vmem:[%s0 + $0xcc] sm:$0xf]
  %v66 = vld [vmem:[%s0 + $0xd0] sm:$0xf]
  %v67 = vld [vmem:[%s0 + $0xd4] sm:$0xf]
  %v68 = vld [vmem:[%s0 + $0xd8] sm:$0xf]
  %v69 = vld [vmem:[%s0 + $0xdc] sm:$0xf]
  %v70 = vld [vmem:[%s0 + $0xe0] sm:$0xf]
  %v71 = vld [vmem:[%s0 + $0xe4] sm:$0xf]
  %v72 = vld [vmem:[%s0 + $0xe8] sm:$0xf]
  %v73 = vld [vmem:[%s0 + $0xec] sm:$0xf]
  %v74 = vld [vmem:[%s0 + $0xf0] sm:$0xf]
  %v75 = vld [vmem:[%s0 + $0xf4] sm:$0xf]
  %v76 = vld [vmem:[%s0 + $0xf8] sm:$0xf]
  %v77 = vld [vmem:[%s0 + $0xfc] sm:$0xf]
  %v78 = vunpack.c.l.bf16 %v14
  %v79 = vunpack.c.l.bf16 %v15
  %v80 = vunpack.c.l.bf16 %v16
  %v81 = vunpack.c.l.bf16 %v17
  %v82 = vunpack.c.l.bf16 %v18
  %v83 = vunpack.c.l.bf16 %v19
  %v84 = vunpack.c.l.bf16 %v20
  %v85 = vunpack.c.l.bf16 %v21
  %v86 = vunpack.c.l.bf16 %v22
  %v87 = vunpack.c.l.bf16 %v23
  %v88 = vunpack.c.l.bf16 %v24
  %v89 = vunpack.c.l.bf16 %v25
  %v90 = vunpack.c.l.bf16 %v26
  %v91 = vunpack.c.l.bf16 %v27
  %v92 = vunpack.c.l.bf16 %v28
  %v93 = vunpack.c.l.bf16 %v29
  %v94 = vunpack.c.l.bf16 %v30
  %v95 = vunpack.c.l.bf16 %v31
  %v96 = vunpack.c.l.bf16 %v32
  %v97 = vunpack.c.l.bf16 %v33
  %v98 = vunpack.c.l.bf16 %v34
  %v99 = vunpack.c.l.bf16 %v35
  %v100 = vunpack.c.l.bf16 %v36
  %v101 = vunpack.c.l.bf16 %v37
  %v102 = vunpack.c.l.bf16 %v38
  %v103 = vunpack.c.l.bf16 %v39
  %v104 = vunpack.c.l.bf16 %v40
  %v105 = vunpack.c.l.bf16 %v41
  %v106 = vunpack.c.l.bf16 %v42
  %v107 = vunpack.c.l.bf16 %v43
  %v108 = vunpack.c.l.bf16 %v44
  %v109 = vunpack.c.l.bf16 %v45
  %v110 = vunpack.c.l.bf16 %v46
  %v111 = vunpack.c.l.bf16 %v47
  %v112 = vunpack.c.l.bf16 %v48
  %v113 = vunpack.c.l.bf16 %v49
  %v114 = vunpack.c.l.bf16 %v50
  %v115 = vunpack.c.l.bf16 %v51
  %v116 = vunpack.c.l.bf16 %v52
  %v117 = vunpack.c.l.bf16 %v53
  %v118 = vunpack.c.l.bf16 %v54
  %v119 = vunpack.c.l.bf16 %v55
  %v120 = vunpack.c.l.bf16 %v56
  %v121 = vunpack.c.l.bf16 %v57
  %v122 = vunpack.c.l.bf16 %v58
  %v123 = vunpack.c.l.bf16 %v59
  %v124 = vunpack.c.l.bf16 %v60
  %v125 = vunpack.c.l.bf16 %v61
  %v126 = vunpack.c.l.bf16 %v62
  %v127 = vunpack.c.l.bf16 %v63
  %v128 = vunpack.c.l.bf16 %v64
  %v129 = vunpack.c.l.bf16 %v65
  %v130 = vunpack.c.l.bf16 %v66
  %v131 = vunpack.c.l.bf16 %v67
  %v132 = vunpack.c.l.bf16 %v68
  %v133 = vunpack.c.l.bf16 %v69
  %v134 = vunpack.c.l.bf16 %v70
  %v135 = vunpack.c.l.bf16 %v71
  %v136 = vunpack.c.l.bf16 %v72
  %v137 = vunpack.c.l.bf16 %v73
  %v138 = vunpack.c.l.bf16 %v74
  %v139 = vunpack.c.l.bf16 %v75
  %v140 = vunpack.c.l.bf16 %v76
  %v141 = vunpack.c.l.bf16 %v77
  %v142 = vld [vmem:[%s1] sm:$0x1]
  %v144 = vperm.slane %v142, 0
  %v146 = vmul.f32 %v78, %v144
  %v147 = vmul.f32 %v79, %v144
  %v148 = vmul.f32 %v80, %v144
  %v149 = vmul.f32 %v81, %v144
  %v150 = vmul.f32 %v82, %v144
  %v151 = vmul.f32 %v83, %v144
  %v152 = vmul.f32 %v84, %v144
  %v153 = vmul.f32 %v85, %v144
  %v154 = vmul.f32 %v86, %v144
  %v155 = vmul.f32 %v87, %v144
  %v156 = vmul.f32 %v88, %v144
  %v157 = vmul.f32 %v89, %v144
  %v158 = vmul.f32 %v90, %v144
  %v159 = vmul.f32 %v91, %v144
  %v160 = vmul.f32 %v92, %v144
  %v161 = vmul.f32 %v93, %v144
  %v162 = vmul.f32 %v94, %v144
  %v163 = vmul.f32 %v95, %v144
  %v164 = vmul.f32 %v96, %v144
  %v165 = vmul.f32 %v97, %v144
  %v166 = vmul.f32 %v98, %v144
  %v167 = vmul.f32 %v99, %v144
  %v168 = vmul.f32 %v100, %v144
  %v169 = vmul.f32 %v101, %v144
  %v170 = vmul.f32 %v102, %v144
  %v171 = vmul.f32 %v103, %v144
  %v172 = vmul.f32 %v104, %v144
  %v173 = vmul.f32 %v105, %v144
  %v174 = vmul.f32 %v106, %v144
  %v175 = vmul.f32 %v107, %v144
  %v176 = vmul.f32 %v108, %v144
  %v177 = vmul.f32 %v109, %v144
  %v178 = vmul.f32 %v110, %v144
  %v179 = vmul.f32 %v111, %v144
  %v180 = vmul.f32 %v112, %v144
  %v181 = vmul.f32 %v113, %v144
  %v182 = vmul.f32 %v114, %v144
  %v183 = vmul.f32 %v115, %v144
  %v184 = vmul.f32 %v116, %v144
  %v185 = vmul.f32 %v117, %v144
  %v186 = vmul.f32 %v118, %v144
  %v187 = vmul.f32 %v119, %v144
  %v188 = vmul.f32 %v120, %v144
  %v189 = vmul.f32 %v121, %v144
  %v190 = vmul.f32 %v122, %v144
  %v191 = vmul.f32 %v123, %v144
  %v192 = vmul.f32 %v124, %v144
  %v193 = vmul.f32 %v125, %v144
  %v194 = vmul.f32 %v126, %v144
  %v195 = vmul.f32 %v127, %v144
  %v196 = vmul.f32 %v128, %v144
  %v197 = vmul.f32 %v129, %v144
  %v198 = vmul.f32 %v130, %v144
  %v199 = vmul.f32 %v131, %v144
  %v200 = vmul.f32 %v132, %v144
  %v201 = vmul.f32 %v133, %v144
  %v202 = vmul.f32 %v134, %v144
  %v203 = vmul.f32 %v135, %v144
  %v204 = vmul.f32 %v136, %v144
  %v205 = vmul.f32 %v137, %v144
  %v206 = vmul.f32 %v138, %v144
  %v207 = vmul.f32 %v139, %v144
  %v208 = vmul.f32 %v140, %v144
  %v209 = vmul.f32 %v141, %v144
  %v210 = vld [vmem:[%s2] sm:$0x1]
  %v212 = vperm.slane %v210, 0
  %v214 = vadd.f32 %v146, %v212
  %v215 = vadd.f32 %v147, %v212
  %v216 = vadd.f32 %v148, %v212
  %v217 = vadd.f32 %v149, %v212
  %v218 = vadd.f32 %v150, %v212
  %v219 = vadd.f32 %v151, %v212
  %v220 = vadd.f32 %v152, %v212
  %v221 = vadd.f32 %v153, %v212
  %v222 = vadd.f32 %v154, %v212
  %v223 = vadd.f32 %v155, %v212
  %v224 = vadd.f32 %v156, %v212
  %v225 = vadd.f32 %v157, %v212
  %v226 = vadd.f32 %v158, %v212
  %v227 = vadd.f32 %v159, %v212
  %v228 = vadd.f32 %v160, %v212
  %v229 = vadd.f32 %v161, %v212
  %v230 = vadd.f32 %v162, %v212
  %v231 = vadd.f32 %v163, %v212
  %v232 = vadd.f32 %v164, %v212
  %v233 = vadd.f32 %v165, %v212
  %v234 = vadd.f32 %v166, %v212
  %v235 = vadd.f32 %v167, %v212
  %v236 = vadd.f32 %v168, %v212
  %v237 = vadd.f32 %v169, %v212
  %v238 = vadd.f32 %v170, %v212
  %v239 = vadd.f32 %v171, %v212
  %v240 = vadd.f32 %v172, %v212
  %v241 = vadd.f32 %v173, %v212
  %v242 = vadd.f32 %v174, %v212
  %v243 = vadd.f32 %v175, %v212
  %v244 = vadd.f32 %v176, %v212
  %v245 = vadd.f32 %v177, %v212
  %v246 = vadd.f32 %v178, %v212
  %v247 = vadd.f32 %v179, %v212
  %v248 = vadd.f32 %v180, %v212
  %v249 = vadd.f32 %v181, %v212
  %v250 = vadd.f32 %v182, %v212
  %v251 = vadd.f32 %v183, %v212
  %v252 = vadd.f32 %v184, %v212
  %v253 = vadd.f32 %v185, %v212
  %v254 = vadd.f32 %v186, %v212
  %v255 = vadd.f32 %v187, %v212
  %v256 = vadd.f32 %v188, %v212
  %v257 = vadd.f32 %v189, %v212
  %v258 = vadd.f32 %v190, %v212
  %v259 = vadd.f32 %v191, %v212
  %v260 = vadd.f32 %v192, %v212
  %v261 = vadd.f32 %v193, %v212
  %v262 = vadd.f32 %v194, %v212
  %v263 = vadd.f32 %v195, %v212
  %v264 = vadd.f32 %v196, %v212
  %v265 = vadd.f32 %v197, %v212
  %v266 = vadd.f32 %v198, %v212
  %v267 = vadd.f32 %v199, %v212
  %v268 = vadd.f32 %v200, %v212
  %v269 = vadd.f32 %v201, %v212
  %v270 = vadd.f32 %v202, %v212
  %v271 = vadd.f32 %v203, %v212
  %v272 = vadd.f32 %v204, %v212
  %v273 = vadd.f32 %v205, %v212
  %v274 = vadd.f32 %v206, %v212
  %v275 = vadd.f32 %v207, %v212
  %v276 = vadd.f32 %v208, %v212
  %v277 = vadd.f32 %v209, %v212
  %v278 = vmax.f32 %v214, 0.0
  %v279 = vmax.f32 %v215, 0.0
  %v280 = vmax.f32 %v216, 0.0
  %v281 = vmax.f32 %v217, 0.0
  %v282 = vmax.f32 %v218, 0.0
  %v283 = vmax.f32 %v219, 0.0
  %v284 = vmax.f32 %v220, 0.0
  %v285 = vmax.f32 %v221, 0.0
  %v286 = vmax.f32 %v222, 0.0
  %v287 = vmax.f32 %v223, 0.0
  %v288 = vmax.f32 %v224, 0.0
  %v289 = vmax.f32 %v225, 0.0
  %v290 = vmax.f32 %v226, 0.0
  %v291 = vmax.f32 %v227, 0.0
  %v292 = vmax.f32 %v228, 0.0
  %v293 = vmax.f32 %v229, 0.0
  %v294 = vmax.f32 %v230, 0.0
  %v295 = vmax.f32 %v231, 0.0
  %v296 = vmax.f32 %v232, 0.0
  %v297 = vmax.f32 %v233, 0.0
  %v298 = vmax.f32 %v234, 0.0
  %v299 = vmax.f32 %v235, 0.0
  %v300 = vmax.f32 %v236, 0.0
  %v301 = vmax.f32 %v237, 0.0
  %v302 = vmax.f32 %v238, 0.0
  %v303 = vmax.f32 %v239, 0.0
  %v304 = vmax.f32 %v240, 0.0
  %v305 = vmax.f32 %v241, 0.0
  %v306 = vmax.f32 %v242, 0.0
  %v307 = vmax.f32 %v243, 0.0
  %v308 = vmax.f32 %v244, 0.0
  %v309 = vmax.f32 %v245, 0.0
  %v310 = vmax.f32 %v246, 0.0
  %v311 = vmax.f32 %v247, 0.0
  %v312 = vmax.f32 %v248, 0.0
  %v313 = vmax.f32 %v249, 0.0
  %v314 = vmax.f32 %v250, 0.0
  %v315 = vmax.f32 %v251, 0.0
  %v316 = vmax.f32 %v252, 0.0
  %v317 = vmax.f32 %v253, 0.0
  %v318 = vmax.f32 %v254, 0.0
  %v319 = vmax.f32 %v255, 0.0
  %v320 = vmax.f32 %v256, 0.0
  %v321 = vmax.f32 %v257, 0.0
  %v322 = vmax.f32 %v258, 0.0
  %v323 = vmax.f32 %v259, 0.0
  %v324 = vmax.f32 %v260, 0.0
  %v325 = vmax.f32 %v261, 0.0
  %v326 = vmax.f32 %v262, 0.0
  %v327 = vmax.f32 %v263, 0.0
  %v328 = vmax.f32 %v264, 0.0
  %v329 = vmax.f32 %v265, 0.0
  %v330 = vmax.f32 %v266, 0.0
  %v331 = vmax.f32 %v267, 0.0
  %v332 = vmax.f32 %v268, 0.0
  %v333 = vmax.f32 %v269, 0.0
  %v334 = vmax.f32 %v270, 0.0
  %v335 = vmax.f32 %v271, 0.0
  %v336 = vmax.f32 %v272, 0.0
  %v337 = vmax.f32 %v273, 0.0
  %v338 = vmax.f32 %v274, 0.0
  %v339 = vmax.f32 %v275, 0.0
  %v340 = vmax.f32 %v276, 0.0
  %v341 = vmax.f32 %v277, 0.0
  %v342 = vpack.c.bf16 %v278, %v278
  %v343 = vpack.c.bf16 %v279, %v279
  %v344 = vpack.c.bf16 %v280, %v280
  %v345 = vpack.c.bf16 %v281, %v281
  %v346 = vpack.c.bf16 %v282, %v282
  %v347 = vpack.c.bf16 %v283, %v283
  %v348 = vpack.c.bf16 %v284, %v284
  %v349 = vpack.c.bf16 %v285, %v285
  %v350 = vpack.c.bf16 %v286, %v286
  %v351 = vpack.c.bf16 %v287, %v287
  %v352 = vpack.c.bf16 %v288, %v288
  %v353 = vpack.c.bf16 %v289, %v289
  %v354 = vpack.c.bf16 %v290, %v290
  %v355 = vpack.c.bf16 %v291, %v291
  %v356 = vpack.c.bf16 %v292, %v292
  %v357 = vpack.c.bf16 %v293, %v293
  %v358 = vpack.c.bf16 %v294, %v294
  %v359 = vpack.c.bf16 %v295, %v295
  %v360 = vpack.c.bf16 %v296, %v296
  %v361 = vpack.c.bf16 %v297, %v297
  %v362 = vpack.c.bf16 %v298, %v298
  %v363 = vpack.c.bf16 %v299, %v299
  %v364 = vpack.c.bf16 %v300, %v300
  %v365 = vpack.c.bf16 %v301, %v301
  %v366 = vpack.c.bf16 %v302, %v302
  %v367 = vpack.c.bf16 %v303, %v303
  %v368 = vpack.c.bf16 %v304, %v304
  %v369 = vpack.c.bf16 %v305, %v305
  %v370 = vpack.c.bf16 %v306, %v306
  %v371 = vpack.c.bf16 %v307, %v307
  %v372 = vpack.c.bf16 %v308, %v308
  %v373 = vpack.c.bf16 %v309, %v309
  %v374 = vpack.c.bf16 %v310, %v310
  %v375 = vpack.c.bf16 %v311, %v311
  %v376 = vpack.c.bf16 %v312, %v312
  %v377 = vpack.c.bf16 %v313, %v313
  %v378 = vpack.c.bf16 %v314, %v314
  %v379 = vpack.c.bf16 %v315, %v315
  %v380 = vpack.c.bf16 %v316, %v316
  %v381 = vpack.c.bf16 %v317, %v317
  %v382 = vpack.c.bf16 %v318, %v318
  %v383 = vpack.c.bf16 %v319, %v319
  %v384 = vpack.c.bf16 %v320, %v320
  %v385 = vpack.c.bf16 %v321, %v321
  %v386 = vpack.c.bf16 %v322, %v322
  %v387 = vpack.c.bf16 %v323, %v323
  %v388 = vpack.c.bf16 %v324, %v324
  %v389 = vpack.c.bf16 %v325, %v325
  %v390 = vpack.c.bf16 %v326, %v326
  %v391 = vpack.c.bf16 %v327, %v327
  %v392 = vpack.c.bf16 %v328, %v328
  %v393 = vpack.c.bf16 %v329, %v329
  %v394 = vpack.c.bf16 %v330, %v330
  %v395 = vpack.c.bf16 %v331, %v331
  %v396 = vpack.c.bf16 %v332, %v332
  %v397 = vpack.c.bf16 %v333, %v333
  %v398 = vpack.c.bf16 %v334, %v334
  %v399 = vpack.c.bf16 %v335, %v335
  %v400 = vpack.c.bf16 %v336, %v336
  %v401 = vpack.c.bf16 %v337, %v337
  %v402 = vpack.c.bf16 %v338, %v338
  %v403 = vpack.c.bf16 %v339, %v339
  %v404 = vpack.c.bf16 %v340, %v340
  %v405 = vpack.c.bf16 %v341, %v341
  %406 = vst [vmem:[%s3] sm:$0xf] %v342
  %407 = vst [vmem:[%s3 + $0x4] sm:$0xf] %v343
  %408 = vst [vmem:[%s3 + $0x8] sm:$0xf] %v344
  %409 = vst [vmem:[%s3 + $0xc] sm:$0xf] %v345
  %410 = vst [vmem:[%s3 + $0x10] sm:$0xf] %v346
  %411 = vst [vmem:[%s3 + $0x14] sm:$0xf] %v347
  %412 = vst [vmem:[%s3 + $0x18] sm:$0xf] %v348
  %413 = vst [vmem:[%s3 + $0x1c] sm:$0xf] %v349
  %414 = vst [vmem:[%s3 + $0x20] sm:$0xf] %v350
  %415 = vst [vmem:[%s3 + $0x24] sm:$0xf] %v351
  %416 = vst [vmem:[%s3 + $0x28] sm:$0xf] %v352
  %417 = vst [vmem:[%s3 + $0x2c] sm:$0xf] %v353
  %418 = vst [vmem:[%s3 + $0x30] sm:$0xf] %v354
  %419 = vst [vmem:[%s3 + $0x34] sm:$0xf] %v355
  %420 = vst [vmem:[%s3 + $0x38] sm:$0xf] %v356
  %421 = vst [vmem:[%s3 + $0x3c] sm:$0xf] %v357
  %422 = vst [vmem:[%s3 + $0x40] sm:$0xf] %v358
  %423 = vst [vmem:[%s3 + $0x44] sm:$0xf] %v359
  %424 = vst [vmem:[%s3 + $0x48] sm:$0xf] %v360
  %425 = vst [vmem:[%s3 + $0x4c] sm:$0xf] %v361
  %426 = vst [vmem:[%s3 + $0x50] sm:$0xf] %v362
  %427 = vst [vmem:[%s3 + $0x54] sm:$0xf] %v363
  %428 = vst [vmem:[%s3 + $0x58] sm:$0xf] %v364
  %429 = vst [vmem:[%s3 + $0x5c] sm:$0xf] %v365
  %430 = vst [vmem:[%s3 + $0x60] sm:$0xf] %v366
  %431 = vst [vmem:[%s3 + $0x64] sm:$0xf] %v367
  %432 = vst [vmem:[%s3 + $0x68] sm:$0xf] %v368
  %433 = vst [vmem:[%s3 + $0x6c] sm:$0xf] %v369
  %434 = vst [vmem:[%s3 + $0x70] sm:$0xf] %v370
  %435 = vst [vmem:[%s3 + $0x74] sm:$0xf] %v371
  %436 = vst [vmem:[%s3 + $0x78] sm:$0xf] %v372
  %437 = vst [vmem:[%s3 + $0x7c] sm:$0xf] %v373
  %438 = vst [vmem:[%s3 + $0x80] sm:$0xf] %v374
  %439 = vst [vmem:[%s3 + $0x84] sm:$0xf] %v375
  %440 = vst [vmem:[%s3 + $0x88] sm:$0xf] %v376
  %441 = vst [vmem:[%s3 + $0x8c] sm:$0xf] %v377
  %442 = vst [vmem:[%s3 + $0x90] sm:$0xf] %v378
  %443 = vst [vmem:[%s3 + $0x94] sm:$0xf] %v379
  %444 = vst [vmem:[%s3 + $0x98] sm:$0xf] %v380
  %445 = vst [vmem:[%s3 + $0x9c] sm:$0xf] %v381
  %446 = vst [vmem:[%s3 + $0xa0] sm:$0xf] %v382
  %447 = vst [vmem:[%s3 + $0xa4] sm:$0xf] %v383
  %448 = vst [vmem:[%s3 + $0xa8] sm:$0xf] %v384
  %449 = vst [vmem:[%s3 + $0xac] sm:$0xf] %v385
  %450 = vst [vmem:[%s3 + $0xb0] sm:$0xf] %v386
  %451 = vst [vmem:[%s3 + $0xb4] sm:$0xf] %v387
  %452 = vst [vmem:[%s3 + $0xb8] sm:$0xf] %v388
  %453 = vst [vmem:[%s3 + $0xbc] sm:$0xf] %v389
  %454 = vst [vmem:[%s3 + $0xc0] sm:$0xf] %v390
  %455 = vst [vmem:[%s3 + $0xc4] sm:$0xf] %v391
  %456 = vst [vmem:[%s3 + $0xc8] sm:$0xf] %v392
  %457 = vst [vmem:[%s3 + $0xcc] sm:$0xf] %v393
  %458 = vst [vmem:[%s3 + $0xd0] sm:$0xf] %v394
  %459 = vst [vmem:[%s3 + $0xd4] sm:$0xf] %v395
  %460 = vst [vmem:[%s3 + $0xd8] sm:$0xf] %v396
  %461 = vst [vmem:[%s3 + $0xdc] sm:$0xf] %v397
  %462 = vst [vmem:[%s3 + $0xe0] sm:$0xf] %v398
  %463 = vst [vmem:[%s3 + $0xe4] sm:$0xf] %v399
  %464 = vst [vmem:[%s3 + $0xe8] sm:$0xf] %v400
  %465 = vst [vmem:[%s3 + $0xec] sm:$0xf] %v401
  %466 = vst [vmem:[%s3 + $0xf0] sm:$0xf] %v402
  %467 = vst [vmem:[%s3 + $0xf4] sm:$0xf] %v403
  %468 = vst [vmem:[%s3 + $0xf8] sm:$0xf] %v404
  %469 = vst [vmem:[%s3 + $0xfc] sm:$0xf] %v405
  // Predicated region
  $region14: #{conv2d_bn_relu.3} parent=0 // pred_check
    _
  $region15: #{conv2d_bn_relu.3} parent=0 // pred_check_branch
    %471 = sbr.rel (0) target = $region17
  $region16: #{conv2d_bn_relu.3} parent=0 // pred_region
    _
  $region17: #{conv2d_bn_relu.3} parent=0 // pred_fallthru
    _
  // Predicated region
  $region18: #{conv2d_bn_relu.3} parent=0 // pred_check
    _
  $region19: #{conv2d_bn_relu.3} parent=0 // pred_check_branch
    %473 = sbr.rel (0) target = $region21
  $region20: #{conv2d_bn_relu.3} parent=0 // pred_region
    _
  $region21: #{conv2d_bn_relu.3} parent=0 // pred_fallthru
    _

// kernel: conv2d_bn_relu.2
$region0: #{conv2d_bn_relu.2}
  #allocation0 [shape = 'u32[]', space=smem, size = 0x4, offset = 0x4, fixed_abs, tag = 'smem constant byte address 0x4 - core index']
  #allocation1 [shape = 'u32[72,128]{1,0:T(1,128)}', space=vmem, size = 0x9000, scoped, tag = 'internal scratch']
  #allocation2 [shape = 'f32[256,128]{1,0:T(8,128)}', space=vmem, size = 0x20000, scoped, tag = 'scratch operand']
  %s0 = inlined_call_operand.vmem [shape: bf16[512,48], index: 0, kind: input, shape index: {}]
  %s1 = inlined_call_operand.vmem [shape: bf16[48,128], index: 1, kind: input, shape index: {}]
  %s2 = inlined_call_operand.vmem [shape: bf16[512,128], index: 2, kind: output, shape index: {0}]
  %s3 = inlined_call_operand.vmem [shape: f32[2,8,128], index: 3, kind: output, shape index: {1}]
  %s4 = inlined_call_operand.vmem [shape: f32[2,8,128], index: 4, kind: output, shape index: {2}]
  %5 = xla_tuple %s2, %s3, %s4
  %s6 = sld [smem:[#allocation0]]
  $region65: #{conv2d_bn_relu.2} parent=0
    _
  %s8 = ssub.s32 1, %s6
  %s9 = scalar_select 0, %s8, %s6
  loop: start=0, step=1, limit=4
  $region2: #{conv2d_bn_relu.2} parent=0 // loop_pre_header
    _
  $region3: #{conv2d_bn_relu.2} parent=0 // loop_header
    %s11 = sphi 0, %s15
    %p12 = scmp.ge.s32.totalorder %s11, 4
    %s18 = sphi 0, %s30
    %s19 = sphi 0, %s26
    %s20 = sphi 0, %s18
    %s21 = sphi 0, %s19
    %s22 = sphi 0, %s20
    %s23 = sphi 0, %s21
    %s35 = sphi 0, %s37
    %s38 = sphi 0, %s35
    %s39 = sphi 0, %s38
    %s55 = sphi 0, %s39
    %s59 = sphi 0, %s59
    %s61 = sphi 0, %s59
    %s62 = sphi 0, %s61
    %s76 = sphi 0, %s62
    %s82 = sphi 0, %s84
    %s85 = sphi 0, %s82
    %s86 = sphi 0, %s85
    %s102 = sphi 0, %s86
    %s108 = sphi 0, %s110
    %s111 = sphi 0, %s108
    %s112 = sphi 0, %s111
    %s128 = sphi 0, %s112
    %s134 = sphi 0, %s136
    %s137 = sphi 0, %s134
    %s138 = sphi 0, %s137
    %s154 = sphi 0, %s138
  $region4: #{conv2d_bn_relu.2} parent=0 // loop_header_branch
    %14 = sbr.rel (%p12) target = $region8
  $region5: #{conv2d_bn_relu.2} parent=0 // loop_body
    %s16 = ssub.s32 %s11, 1
    %s17 = ssub.s32 %s11, 2
    %s24 = sadd.s32 1, %s19
    %p25 = scmp.ge.s32.totalorder %s24, 1
    %s26 = scalar_select %p25, 0, %s24
    %s27 = sadd.s32 1, %s18
    %s28 = scalar_select %p25, %s27, %s18
    %p29 = scmp.ge.s32.totalorder %s28, 2
    %s30 = scalar_select %p29, 0, %s28
    %s31 = ssub.s32 %s18, %s30
    %s32 = ssub.s32 %s19, %s26
    %s33 = sor.u32 %s31, %s32
    %p34 = scmp.eq.s32.totalorder %s33, 0
    %s36 = sadd.s32 %s35, 1
    %s37 = scalar_select %p34, %s35, %s36
    %p40 = pneg %p34
    %p41 = scmp.eq.s32.totalorder %s11, 1
    %p42 = por %p40, %p41
    %p43 = scmp.ne.s32.totalorder %s35, %s38
    %p44 = scmp.eq.s32.totalorder %s11, 0
    %p45 = por %p43, %p44
    %p46 = scmp.ne.s32.totalorder %s35, %s38
    %p47 = scmp.eq.s32.totalorder %s16, 1
    %p48 = por %p46, %p47
    %p49 = scmp.ne.s32.totalorder %s38, %s39
    %p50 = scmp.eq.s32.totalorder %s16, 0
    %p51 = por %p49, %p50
    %p52 = scmp.ne.s32.totalorder %s38, %s39
    %p53 = scmp.eq.s32.totalorder %s17, 1
    %p54 = por %p52, %p53
    %p56 = scmp.ne.s32.totalorder %s39, %s55
    %p57 = scmp.eq.s32.totalorder %s17, 0
    %p58 = por %p56, %p57
    %s60 = sadd.s32 %s59, 1
    %p63 = scmp.eq.s32.totalorder %s11, 1
    %p64 = scmp.ne.s32.totalorder %s59, %s61
    %p65 = scmp.eq.s32.totalorder %s11, 0
    %p66 = por %p64, %p65
    %p67 = scmp.ne.s32.totalorder %s59, %s61
    %p68 = scmp.eq.s32.totalorder %s16, 1
    %p69 = por %p67, %p68
    %p70 = scmp.ne.s32.totalorder %s61, %s62
    %p71 = scmp.eq.s32.totalorder %s16, 0
    %p72 = por %p70, %p71
    %p73 = scmp.ne.s32.totalorder %s61, %s62
    %p74 = scmp.eq.s32.totalorder %s17, 1
    %p75 = por %p73, %p74
    %p77 = scmp.ne.s32.totalorder %s62, %s76
    %p78 = scmp.eq.s32.totalorder %s17, 0
    %p79 = por %p77, %p78
    %s80 = ssub.s32 %s18, %s30
    %p81 = scmp.eq.s32.totalorder %s80, 0
    %s83 = sadd.s32 %s82, 1
    %s84 = scalar_select %p81, %s82, %s83
    %p87 = pneg %p81
    %p88 = scmp.eq.s32.totalorder %s11, 1
    %p89 = por %p87, %p88
    %p90 = scmp.ne.s32.totalorder %s82, %s85
    %p91 = scmp.eq.s32.totalorder %s11, 0
    %p92 = por %p90, %p91
    %p93 = scmp.ne.s32.totalorder %s82, %s85
    %p94 = scmp.eq.s32.totalorder %s16, 1
    %p95 = por %p93, %p94
    %p96 = scmp.ne.s32.totalorder %s85, %s86
    %p97 = scmp.eq.s32.totalorder %s16, 0
    %p98 = por %p96, %p97
    %p99 = scmp.ne.s32.totalorder %s85, %s86
    %p100 = scmp.eq.s32.totalorder %s17, 1
    %p101 = por %p99, %p100
    %p103 = scmp.ne.s32.totalorder %s86, %s102
    %p104 = scmp.eq.s32.totalorder %s17, 0
    %p105 = por %p103, %p104
    %s106 = ssub.s32 %s18, %s30
    %p107 = scmp.eq.s32.totalorder %s106, 0
    %s109 = sadd.s32 %s108, 1
    %s110 = scalar_select %p107, %s108, %s109
    %p113 = pneg %p107
    %p114 = scmp.eq.s32.totalorder %s11, 1
    %p115 = por %p113, %p114
    %p116 = scmp.ne.s32.totalorder %s108, %s111
    %p117 = scmp.eq.s32.totalorder %s11, 0
    %p118 = por %p116, %p117
    %p119 = scmp.ne.s32.totalorder %s108, %s111
    %p120 = scmp.eq.s32.totalorder %s16, 1
    %p121 = por %p119, %p120
    %p122 = scmp.ne.s32.totalorder %s111, %s112
    %p123 = scmp.eq.s32.totalorder %s16, 0
    %p124 = por %p122, %p123
    %p125 = scmp.ne.s32.totalorder %s111, %s112
    %p126 = scmp.eq.s32.totalorder %s17, 1
    %p127 = por %p125, %p126
    %p129 = scmp.ne.s32.totalorder %s112, %s128
    %p130 = scmp.eq.s32.totalorder %s17, 0
    %p131 = por %p129, %p130
    %s132 = ssub.s32 %s18, %s30
    %p133 = scmp.eq.s32.totalorder %s132, 0
    %s135 = sadd.s32 %s134, 1
    %s136 = scalar_select %p133, %s134, %s135
    %p139 = pneg %p133
    %p140 = scmp.eq.s32.totalorder %s11, 1
    %p141 = por %p139, %p140
    %p142 = scmp.ne.s32.totalorder %s134, %s137
    %p143 = scmp.eq.s32.totalorder %s11, 0
    %p144 = por %p142, %p143
    %p145 = scmp.ne.s32.totalorder %s134, %s137
    %p146 = scmp.eq.s32.totalorder %s16, 1
    %p147 = por %p145, %p146
    %p148 = scmp.ne.s32.totalorder %s137, %s138
    %p149 = scmp.eq.s32.totalorder %s16, 0
    %p150 = por %p148, %p149
    %p151 = scmp.ne.s32.totalorder %s137, %s138
    %p152 = scmp.eq.s32.totalorder %s17, 1
    %p153 = por %p151, %p152
    %p155 = scmp.ne.s32.totalorder %s138, %s154
    %p156 = scmp.eq.s32.totalorder %s17, 0
    %p157 = por %p155, %p156
    %p158 = scmp.le.s32.totalorder 1, %s11
    %p159 = scmp.lt.s32.totalorder %s11, 3
    %p160 = pnand %p158, %p159
    %p161 = pneg %p160
    // Predicated region
    $region9: #{conv2d_bn_relu.2} parent=5 // pred_check
      _
    $region10: #{conv2d_bn_relu.2} parent=5 // pred_check_branch
      %163 = sbr.rel (%p160) target = $region12
    $region11: #{conv2d_bn_relu.2} parent=5 // pred_region
      %s164 = ssub.s32 %s11, 1
      // Predicated region
      $region13: #{conv2d_bn_relu.2} parent=11 // pred_check
        %p165 = pneg %p72
      $region14: #{conv2d_bn_relu.2} parent=11 // pred_check_branch
        %167 = sbr.rel (%p165) target = $region16
      $region15: #{conv2d_bn_relu.2} parent=11 // pred_region
        _
      $region16: #{conv2d_bn_relu.2} parent=11 // pred_fallthru
        _
    $region12: #{conv2d_bn_relu.2} parent=5 // pred_fallthru
      _
    %p168 = scmp.lt.s32.totalorder %s11, 2
    // Predicated region
    $region17: #{conv2d_bn_relu.2} parent=5 // pred_check
      %p169 = pneg %p168
    $region18: #{conv2d_bn_relu.2} parent=5 // pred_check_branch
      %171 = sbr.rel (%p169) target = $region20
    $region19: #{conv2d_bn_relu.2} parent=5 // pred_region
      // Predicated region
      $region21: #{conv2d_bn_relu.2} parent=19 // pred_check
        %p172 = pneg %p45
      $region22: #{conv2d_bn_relu.2} parent=19 // pred_check_branch
        %174 = sbr.rel (%p172) target = $region24
      $region23: #{conv2d_bn_relu.2} parent=19 // pred_region
        %s175 = smul.u32 32, %s18
        %p176 = scmp.lt.s32.totalorder %s175, 63
        %s177 = scalar_select %p176, %s175, 63
        %p178 = scmp.lt.s32.totalorder %s19, 0
        %s179 = scalar_select %p178, %s19, 0
        %s180 = sadd.s32 %s179, %s177
        %s181 = smul.addr %s180, 4
        %s182 = scalar_lea.vmem %s0, %s181
        %s183 = smul.u32 32, %s18
      $region24: #{conv2d_bn_relu.2} parent=19 // pred_fallthru
        _
    $region20: #{conv2d_bn_relu.2} parent=5 // pred_fallthru
      _
    %p184 = scmp.le.s32.totalorder 1, %s11
    %p185 = scmp.lt.s32.totalorder %s11, 3
    %p186 = pnand %p184, %p185
    %p187 = pneg %p186
    // Predicated region
    $region25: #{conv2d_bn_relu.2} parent=5 // pred_check
      _
    $region26: #{conv2d_bn_relu.2} parent=5 // pred_check_branch
      %189 = sbr.rel (%p186) target = $region28
    $region27: #{conv2d_bn_relu.2} parent=5 // pred_region
      %s190 = ssub.s32 %s11, 1
      %s191 = smul.u32 32, %s20
      %p192 = scmp.lt.s32.totalorder %s191, 63
      %s193 = scalar_select %p192, %s191, 63
      %p194 = scmp.lt.s32.totalorder %s21, 0
      %s195 = scalar_select %p194, %s21, 0
      %s196 = sadd.s32 %s195, %s193
      %s197 = smul.addr %s196, 4
      %s198 = scalar_lea.vmem %s0, %s197
      %p199 = pneg %p51
      %p200 = pneg %p48
      %p201 = pneg %p72
      %p202 = pneg %p69
      %p203 = pneg %p98
      %p204 = pneg %p95
      %s205 = smul.u32 32, %s20
      %p206 = scmp.lt.s32.totalorder %s205, 63
      %s207 = scalar_select %p206, %s205, 63
      %s208 = smul.addr %s207, 4
      %s209 = scalar_lea.vmem %s2, %s208
      %p210 = pneg %p124
      %p211 = pneg %p121
      %p212 = scmp.lt.s32.totalorder %s20, 1
      %s213 = scalar_select %p212, %s20, 1
      %s214 = smul.addr %s213, 8
      %s215 = scalar_lea.vmem %s3, %s214
      %p216 = pneg %p150
      %p217 = pneg %p147
      %p218 = scmp.lt.s32.totalorder %s20, 1
      %s219 = scalar_select %p218, %s20, 1
      %s220 = smul.addr %s219, 8
      %s221 = scalar_lea.vmem %s4, %s220
      %s222 = smul.u32 32, %s20
      %p223 = scmp.lt.s32.totalorder %s222, 63
      %s224 = scalar_select %p223, %s222, 63
      %p225 = scmp.lt.s32.totalorder %s21, 0
      %s226 = scalar_select %p225, %s21, 0
      %s227 = sadd.s32 %s226, %s224
      %s228 = smul.addr %s227, 4
      %s229 = scalar_lea.vmem %s0, %s228
      %s230 = smul.u32 32, %s20
      %s231 = smul.u32 32, %s20
      %p232 = scmp.lt.s32.totalorder %s231, 63
      %s233 = scalar_select %p232, %s231, 63
      %s234 = smul.addr %s233, 4
      %s235 = scalar_lea.vmem %s2, %s234
      %s236 = smul.u32 32, %s20
      %p237 = scmp.lt.s32.totalorder %s20, 1
      %s238 = scalar_select %p237, %s20, 1
      %s239 = smul.addr %s238, 8
      %s240 = scalar_lea.vmem %s3, %s239
      %p241 = scmp.lt.s32.totalorder %s20, 1
      %s242 = scalar_select %p241, %s20, 1
      %s243 = smul.addr %s242, 8
      %s244 = scalar_lea.vmem %s4, %s243
      %p246 = scmp.eq.s32.totalorder %s21, 0
      // Predicated region
      $region29: #{conv2d_bn_relu.2} parent=27 // pred_check
        %p247 = pneg %p246
      $region30: #{conv2d_bn_relu.2} parent=27 // pred_check_branch
        %249 = sbr.rel (%p247) target = $region32
      $region31: #{conv2d_bn_relu.2} parent=27 // pred_region
        %250 = vst [vmem:[#allocation2] sm:$0xff] 0.0
        %251 = vst [vmem:[#allocation2 + $0x8] sm:$0xff] 0.0
        %252 = vst [vmem:[#allocation2 + $0x10] sm:$0xff] 0.0
        %253 = vst [vmem:[#allocation2 + $0x18] sm:$0xff] 0.0
        %254 = vst [vmem:[#allocation2 + $0x20] sm:$0xff] 0.0
        %255 = vst [vmem:[#allocation2 + $0x28] sm:$0xff] 0.0
        %256 = vst [vmem:[#allocation2 + $0x30] sm:$0xff] 0.0
        %257 = vst [vmem:[#allocation2 + $0x38] sm:$0xff] 0.0
        %258 = vst [vmem:[#allocation2 + $0x40] sm:$0xff] 0.0
        %259 = vst [vmem:[#allocation2 + $0x48] sm:$0xff] 0.0
        %260 = vst [vmem:[#allocation2 + $0x50] sm:$0xff] 0.0
        %261 = vst [vmem:[#allocation2 + $0x58] sm:$0xff] 0.0
        %262 = vst [vmem:[#allocation2 + $0x60] sm:$0xff] 0.0
        %263 = vst [vmem:[#allocation2 + $0x68] sm:$0xff] 0.0
        %264 = vst [vmem:[#allocation2 + $0x70] sm:$0xff] 0.0
        %265 = vst [vmem:[#allocation2 + $0x78] sm:$0xff] 0.0
        %266 = vst [vmem:[#allocation2 + $0x80] sm:$0xff] 0.0
        %267 = vst [vmem:[#allocation2 + $0x88] sm:$0xff] 0.0
        %268 = vst [vmem:[#allocation2 + $0x90] sm:$0xff] 0.0
        %269 = vst [vmem:[#allocation2 + $0x98] sm:$0xff] 0.0
        %270 = vst [vmem:[#allocation2 + $0xa0] sm:$0xff] 0.0
        %271 = vst [vmem:[#allocation2 + $0xa8] sm:$0xff] 0.0
        %272 = vst [vmem:[#allocation2 + $0xb0] sm:$0xff] 0.0
        %273 = vst [vmem:[#allocation2 + $0xb8] sm:$0xff] 0.0
        %274 = vst [vmem:[#allocation2 + $0xc0] sm:$0xff] 0.0
        %275 = vst [vmem:[#allocation2 + $0xc8] sm:$0xff] 0.0
        %276 = vst [vmem:[#allocation2 + $0xd0] sm:$0xff] 0.0
        %277 = vst [vmem:[#allocation2 + $0xd8] sm:$0xff] 0.0
        %278 = vst [vmem:[#allocation2 + $0xe0] sm:$0xff] 0.0
        %279 = vst [vmem:[#allocation2 + $0xe8] sm:$0xff] 0.0
        %280 = vst [vmem:[#allocation2 + $0xf0] sm:$0xff] 0.0
        %281 = vst [vmem:[#allocation2 + $0xf8] sm:$0xff] 0.0
      $region32: #{conv2d_bn_relu.2} parent=27 // pred_fallthru
        _
      %v282 = vld [vmem:[%s1] sm:$0xf]
      %v283 = vld [vmem:[%s1 + $0x4] sm:$0xf]
      %v284 = vld [vmem:[%s1 + $0x8] sm:$0xf]
      %v285 = vld [vmem:[%s1 + $0xc] sm:$0xf]
      %v286 = vld [vmem:[%s1 + $0x10] sm:$0xf]
      %v287 = vld [vmem:[%s1 + $0x14] sm:$0xf]
      %v288 = vld [vmem:[#allocation2] sm:$0xff]
      %v289 = vld [vmem:[#allocation2 + $0x8] sm:$0xff]
      %v290 = vld [vmem:[#allocation2 + $0x10] sm:$0xff]
      %v291 = vld [vmem:[#allocation2 + $0x18] sm:$0xff]
      %v292 = vld [vmem:[#allocation2 + $0x20] sm:$0xff]
      %v293 = vld [vmem:[#allocation2 + $0x28] sm:$0xff]
      %v294 = vld [vmem:[#allocation2 + $0x30] sm:$0xff]
      %v295 = vld [vmem:[#allocation2 + $0x38] sm:$0xff]
      %v296 = vld [vmem:[#allocation2 + $0x40] sm:$0xff]
      %v297 = vld [vmem:[#allocation2 + $0x48] sm:$0xff]
      %v298 = vld [vmem:[#allocation2 + $0x50] sm:$0xff]
      %v299 = vld [vmem:[#allocation2 + $0x58] sm:$0xff]
      %v300 = vld [vmem:[#allocation2 + $0x60] sm:$0xff]
      %v301 = vld [vmem:[#allocation2 + $0x68] sm:$0xff]
      %v302 = vld [vmem:[#allocation2 + $0x70] sm:$0xff]
      %v303 = vld [vmem:[#allocation2 + $0x78] sm:$0xff]
      %v304 = vld [vmem:[#allocation2 + $0x80] sm:$0xff]
      %v305 = vld [vmem:[#allocation2 + $0x88] sm:$0xff]
      %v306 = vld [vmem:[#allocation2 + $0x90] sm:$0xff]
      %v307 = vld [vmem:[#allocation2 + $0x98] sm:$0xff]
      %v308 = vld [vmem:[#allocation2 + $0xa0] sm:$0xff]
      %v309 = vld [vmem:[#allocation2 + $0xa8] sm:$0xff]
      %v310 = vld [vmem:[#allocation2 + $0xb0] sm:$0xff]
      %v311 = vld [vmem:[#allocation2 + $0xb8] sm:$0xff]
      %v312 = vld [vmem:[#allocation2 + $0xc0] sm:$0xff]
      %v313 = vld [vmem:[#allocation2 + $0xc8] sm:$0xff]
      %v314 = vld [vmem:[#allocation2 + $0xd0] sm:$0xff]
      %v315 = vld [vmem:[#allocation2 + $0xd8] sm:$0xff]
      %v316 = vld [vmem:[#allocation2 + $0xe0] sm:$0xff]
      %v317 = vld [vmem:[#allocation2 + $0xe8] sm:$0xff]
      %v318 = vld [vmem:[#allocation2 + $0xf0] sm:$0xff]
      %v319 = vld [vmem:[#allocation2 + $0xf8] sm:$0xff]
      %v320 = vld [vmem:[%s229] sm:$0xf]
      %v321 = vld [vmem:[%s229 + $0x4] sm:$0xf]
      %v322 = vld [vmem:[%s229 + $0x8] sm:$0xf]
      %v323 = vld [vmem:[%s229 + $0xc] sm:$0xf]
      %v324 = vld [vmem:[%s229 + $0x10] sm:$0xf]
      %v325 = vld [vmem:[%s229 + $0x14] sm:$0xf]
      %v326 = vld [vmem:[%s229 + $0x18] sm:$0xf]
      %v327 = vld [vmem:[%s229 + $0x1c] sm:$0xf]
      %v328 = vld [vmem:[%s229 + $0x20] sm:$0xf]
      %v329 = vld [vmem:[%s229 + $0x24] sm:$0xf]
      %v330 = vld [vmem:[%s229 + $0x28] sm:$0xf]
      %v331 = vld [vmem:[%s229 + $0x2c] sm:$0xf]
      %v332 = vld [vmem:[%s229 + $0x30] sm:$0xf]
      %v333 = vld [vmem:[%s229 + $0x34] sm:$0xf]
      %v334 = vld [vmem:[%s229 + $0x38] sm:$0xf]
      %v335 = vld [vmem:[%s229 + $0x3c] sm:$0xf]
      %v336 = vld [vmem:[%s229 + $0x40] sm:$0xf]
      %v337 = vld [vmem:[%s229 + $0x44] sm:$0xf]
      %v338 = vld [vmem:[%s229 + $0x48] sm:$0xf]
      %v339 = vld [vmem:[%s229 + $0x4c] sm:$0xf]
      %v340 = vld [vmem:[%s229 + $0x50] sm:$0xf]
      %v341 = vld [vmem:[%s229 + $0x54] sm:$0xf]
      %v342 = vld [vmem:[%s229 + $0x58] sm:$0xf]
      %v343 = vld [vmem:[%s229 + $0x5c] sm:$0xf]
      %v344 = vld [vmem:[%s229 + $0x60] sm:$0xf]
      %v345 = vld [vmem:[%s229 + $0x64] sm:$0xf]
      %v346 = vld [vmem:[%s229 + $0x68] sm:$0xf]
      %v347 = vld [vmem:[%s229 + $0x6c] sm:$0xf]
      %v348 = vld [vmem:[%s229 + $0x70] sm:$0xf]
      %v349 = vld [vmem:[%s229 + $0x74] sm:$0xf]
      %v350 = vld [vmem:[%s229 + $0x78] sm:$0xf]
      %v351 = vld [vmem:[%s229 + $0x7c] sm:$0xf]
      %v384 = vunpack.c.l.b16 %v320
      %v385 = vunpack.c.l.b16 %v321
      %v386 = vunpack.c.l.b16 %v322
      %v387 = vunpack.c.l.b16 %v323
      %v388 = vunpack.c.l.b16 %v324
      %v389 = vunpack.c.l.b16 %v325
      %v390 = vunpack.c.l.b16 %v326
      %v391 = vunpack.c.l.b16 %v327
      %v392 = vunpack.c.l.b16 %v328
      %v393 = vunpack.c.l.b16 %v329
      %v394 = vunpack.c.l.b16 %v330
      %v395 = vunpack.c.l.b16 %v331
      %v396 = vunpack.c.l.b16 %v332
      %v397 = vunpack.c.l.b16 %v333
      %v398 = vunpack.c.l.b16 %v334
      %v399 = vunpack.c.l.b16 %v335
      %v400 = vunpack.c.l.b16 %v336
      %v401 = vunpack.c.l.b16 %v337
      %v402 = vunpack.c.l.b16 %v338
      %v403 = vunpack.c.l.b16 %v339
      %v404 = vunpack.c.l.b16 %v340
      %v405 = vunpack.c.l.b16 %v341
      %v406 = vunpack.c.l.b16 %v342
      %v407 = vunpack.c.l.b16 %v343
      %v408 = vunpack.c.l.b16 %v344
      %v409 = vunpack.c.l.b16 %v345
      %v410 = vunpack.c.l.b16 %v346
      %v411 = vunpack.c.l.b16 %v347
      %v412 = vunpack.c.l.b16 %v348
      %v413 = vunpack.c.l.b16 %v349
      %v414 = vunpack.c.l.b16 %v350
      %v415 = vunpack.c.l.b16 %v351
      %v416 = vpack.c.b16 %v385, %v384
      %v417 = vpack.c.b16 %v387, %v386
      %v418 = vpack.c.b16 %v389, %v388
      %v419 = vpack.c.b16 %v391, %v390
      %v420 = vpack.c.b16 %v393, %v392
      %v421 = vpack.c.b16 %v395, %v394
      %v422 = vpack.c.b16 %v397, %v396
      %v423 = vpack.c.b16 %v399, %v398
      %v424 = vpack.c.b16 %v401, %v400
      %v425 = vpack.c.b16 %v403, %v402
      %v426 = vpack.c.b16 %v405, %v404
      %v427 = vpack.c.b16 %v407, %v406
      %v428 = vpack.c.b16 %v409, %v408
      %v429 = vpack.c.b16 %v411, %v410
      %v430 = vpack.c.b16 %v413, %v412
      %v431 = vpack.c.b16 %v415, %v414
      %v438 = vunpack.c.l.b16 %v282
      %v439 = vunpack.c.l.b16 %v283
      %v440 = vunpack.c.l.b16 %v284
      %v441 = vunpack.c.l.b16 %v285
      %v442 = vunpack.c.l.b16 %v286
      %v443 = vunpack.c.l.b16 %v287
      %v444 = vpack.c.b16 %v439, %v438
      %v445 = vpack.c.b16 %v441, %v440
      %v446 = vpack.c.b16 %v443, %v442
      %vm450 = vcmask 392192
      %v452 = vsel %vm450, %v416, 0
      %v455 = vsel %vm450, %v417, 0
      %v458 = vsel %vm450, %v418, 0
      %v461 = vsel %vm450, %v419, 0
      %v464 = vsel %vm450, %v420, 0
      %v467 = vsel %vm450, %v421, 0
      %v470 = vsel %vm450, %v422, 0
      %v473 = vsel %vm450, %v423, 0
      %v476 = vsel %vm450, %v424, 0
      %v479 = vsel %vm450, %v425, 0
      %v482 = vsel %vm450, %v426, 0
      %v485 = vsel %vm450, %v427, 0
      %v488 = vsel %vm450, %v428, 0
      %v491 = vsel %vm450, %v429, 0
      %v494 = vsel %vm450, %v430, 0
      %v497 = vsel %vm450, %v431, 0
      %499 = vmatpush.bf16.msra.mxu0 0
      %500 = vmatpush.bf16.msra.mxu0 0
      %501 = vmatpush.bf16.msra.mxu0 0
      %502 = vmatpush.bf16.msra.mxu0 0
      %503 = vmatpush.bf16.msra.mxu0 0
      %504 = vmatpush.bf16.msra.mxu0 %v446
      %505 = vmatpush.bf16.msra.mxu0 %v445
      %506 = vmatpush.bf16.msra.mxu0 %v444
      %507 = vmatmul.bf16.gmra.mxu0 %v452
      %v508 = vpop.f32.mrf.mxu0
      %v509 = vadd.f32 0.0, %v508
      %v510 = vpop.f32.mrf.mxu0
      %v511 = vadd.f32 0.0, %v510
      %512 = vmatmul.bf16.gmra.mxu0 %v455
      %v513 = vpop.f32.mrf.mxu0
      %v514 = vadd.f32 0.0, %v513
      %v515 = vpop.f32.mrf.mxu0
      %v516 = vadd.f32 0.0, %v515
      %517 = vmatmul.bf16.gmra.mxu0 %v458
      %v518 = vpop.f32.mrf.mxu0
      %v519 = vadd.f32 0.0, %v518
      %v520 = vpop.f32.mrf.mxu0
      %v521 = vadd.f32 0.0, %v520
      %522 = vmatmul.bf16.gmra.mxu0 %v461
      %v523 = vpop.f32.mrf.mxu0
      %v524 = vadd.f32 0.0, %v523
      %v525 = vpop.f32.mrf.mxu0
      %v526 = vadd.f32 0.0, %v525
      %527 = vmatmul.bf16.gmra.mxu0 %v464
      %v528 = vpop.f32.mrf.mxu0
      %v529 = vadd.f32 0.0, %v528
      %v530 = vpop.f32.mrf.mxu0
      %v531 = vadd.f32 0.0, %v530
      %532 = vmatmul.bf16.gmra.mxu0 %v467
      %v533 = vpop.f32.mrf.mxu0
      %v534 = vadd.f32 0.0, %v533
      %v535 = vpop.f32.mrf.mxu0
      %v536 = vadd.f32 0.0, %v535
      %537 = vmatmul.bf16.gmra.mxu0 %v470
      %v538 = vpop.f32.mrf.mxu0
      %v539 = vadd.f32 0.0, %v538
      %v540 = vpop.f32.mrf.mxu0
      %v541 = vadd.f32 0.0, %v540
      %542 = vmatmul.bf16.gmra.mxu0 %v473
      %v543 = vpop.f32.mrf.mxu0
      %v544 = vadd.f32 0.0, %v543
      %v545 = vpop.f32.mrf.mxu0
      %v546 = vadd.f32 0.0, %v545
      %547 = vmatmul.bf16.gmra.mxu0 %v476
      %v548 = vpop.f32.mrf.mxu0
      %v549 = vadd.f32 0.0, %v548
      %v550 = vpop.f32.mrf.mxu0
      %v551 = vadd.f32 0.0, %v550
      %552 = vmatmul.bf16.gmra.mxu0 %v479
      %v553 = vpop.f32.mrf.mxu0
      %v554 = vadd.f32 0.0, %v553
      %v555 = vpop.f32.mrf.mxu0
      %v556 = vadd.f32 0.0, %v555
      %557 = vmatmul.bf16.gmra.mxu0 %v482
      %v558 = vpop.f32.mrf.mxu0
      %v559 = vadd.f32 0.0, %v558
      %v560 = vpop.f32.mrf.mxu0
      %v561 = vadd.f32 0.0, %v560
      %562 = vmatmul.bf16.gmra.mxu0 %v485
      %v563 = vpop.f32.mrf.mxu0
      %v564 = vadd.f32 0.0, %v563
      %v565 = vpop.f32.mrf.mxu0
      %v566 = vadd.f32 0.0, %v565
      %567 = vmatmul.bf16.gmra.mxu0 %v488
      %v568 = vpop.f32.mrf.mxu0
      %v569 = vadd.f32 0.0, %v568
      %v570 = vpop.f32.mrf.mxu0
      %v571 = vadd.f32 0.0, %v570
      %572 = vmatmul.bf16.gmra.mxu0 %v491
      %v573 = vpop.f32.mrf.mxu0
      %v574 = vadd.f32 0.0, %v573
      %v575 = vpop.f32.mrf.mxu0
      %v576 = vadd.f32 0.0, %v575
      %577 = vmatmul.bf16.gmra.mxu0 %v494
      %v578 = vpop.f32.mrf.mxu0
      %v579 = vadd.f32 0.0, %v578
      %v580 = vpop.f32.mrf.mxu0
      %v581 = vadd.f32 0.0, %v580
      %582 = vmatmul.bf16.gmra.mxu0 %v497
      %v583 = vpop.f32.mrf.mxu0
      %v584 = vadd.f32 0.0, %v583
      %v585 = vpop.f32.mrf.mxu0
      %v586 = vadd.f32 0.0, %v585
      %587 = vdwg.mxu0
      %v588 = vadd.f32 %v288, %v509
      %v589 = vadd.f32 %v289, %v511
      %v590 = vadd.f32 %v290, %v514
      %v591 = vadd.f32 %v291, %v516
      %v592 = vadd.f32 %v292, %v519
      %v593 = vadd.f32 %v293, %v521
      %v594 = vadd.f32 %v294, %v524
      %v595 = vadd.f32 %v295, %v526
      %v596 = vadd.f32 %v296, %v529
      %v597 = vadd.f32 %v297, %v531
      %v598 = vadd.f32 %v298, %v534
      %v599 = vadd.f32 %v299, %v536
      %v600 = vadd.f32 %v300, %v539
      %v601 = vadd.f32 %v301, %v541
      %v602 = vadd.f32 %v302, %v544
      %v603 = vadd.f32 %v303, %v546
      %v604 = vadd.f32 %v304, %v549
      %v605 = vadd.f32 %v305, %v551
      %v606 = vadd.f32 %v306, %v554
      %v607 = vadd.f32 %v307, %v556
      %v608 = vadd.f32 %v308, %v559
      %v609 = vadd.f32 %v309, %v561
      %v610 = vadd.f32 %v310, %v564
      %v611 = vadd.f32 %v311, %v566
      %v612 = vadd.f32 %v312, %v569
      %v613 = vadd.f32 %v313, %v571
      %v614 = vadd.f32 %v314, %v574
      %v615 = vadd.f32 %v315, %v576
      %v616 = vadd.f32 %v316, %v579
      %v617 = vadd.f32 %v317, %v581
      %v618 = vadd.f32 %v318, %v584
      %v619 = vadd.f32 %v319, %v586
      %620 = vst [vmem:[#allocation2] sm:$0xff] %v588
      %621 = vst [vmem:[#allocation2 + $0x8] sm:$0xff] %v589
      %622 = vst [vmem:[#allocation2 + $0x10] sm:$0xff] %v590
      %623 = vst [vmem:[#allocation2 + $0x18] sm:$0xff] %v591
      %624 = vst [vmem:[#allocation2 + $0x20] sm:$0xff] %v592
      %625 = vst [vmem:[#allocation2 + $0x28] sm:$0xff] %v593
      %626 = vst [vmem:[#allocation2 + $0x30] sm:$0xff] %v594
      %627 = vst [vmem:[#allocation2 + $0x38] sm:$0xff] %v595
      %628 = vst [vmem:[#allocation2 + $0x40] sm:$0xff] %v596
      %629 = vst [vmem:[#allocation2 + $0x48] sm:$0xff] %v597
      %630 = vst [vmem:[#allocation2 + $0x50] sm:$0xff] %v598
      %631 = vst [vmem:[#allocation2 + $0x58] sm:$0xff] %v599
      %632 = vst [vmem:[#allocation2 + $0x60] sm:$0xff] %v600
      %633 = vst [vmem:[#allocation2 + $0x68] sm:$0xff] %v601
      %634 = vst [vmem:[#allocation2 + $0x70] sm:$0xff] %v602
      %635 = vst [vmem:[#allocation2 + $0x78] sm:$0xff] %v603
      %636 = vst [vmem:[#allocation2 + $0x80] sm:$0xff] %v604
      %637 = vst [vmem:[#allocation2 + $0x88] sm:$0xff] %v605
      %638 = vst [vmem:[#allocation2 + $0x90] sm:$0xff] %v606
      %639 = vst [vmem:[#allocation2 + $0x98] sm:$0xff] %v607
      %640 = vst [vmem:[#allocation2 + $0xa0] sm:$0xff] %v608
      %641 = vst [vmem:[#allocation2 + $0xa8] sm:$0xff] %v609
      %642 = vst [vmem:[#allocation2 + $0xb0] sm:$0xff] %v610
      %643 = vst [vmem:[#allocation2 + $0xb8] sm:$0xff] %v611
      %644 = vst [vmem:[#allocation2 + $0xc0] sm:$0xff] %v612
      %645 = vst [vmem:[#allocation2 + $0xc8] sm:$0xff] %v613
      %646 = vst [vmem:[#allocation2 + $0xd0] sm:$0xff] %v614
      %647 = vst [vmem:[#allocation2 + $0xd8] sm:$0xff] %v615
      %648 = vst [vmem:[#allocation2 + $0xe0] sm:$0xff] %v616
      %649 = vst [vmem:[#allocation2 + $0xe8] sm:$0xff] %v617
      %650 = vst [vmem:[#allocation2 + $0xf0] sm:$0xff] %v618
      %651 = vst [vmem:[#allocation2 + $0xf8] sm:$0xff] %v619
      // Predicated region
      $region33: #{conv2d_bn_relu.2} parent=27 // pred_check
        %p652 = pneg %p246
      $region34: #{conv2d_bn_relu.2} parent=27 // pred_check_branch
        %654 = sbr.rel (%p652) target = $region36
      $region35: #{conv2d_bn_relu.2} parent=27 // pred_region
        %v655 = vld [vmem:[#allocation2] sm:$0xff]
        %v656 = vld [vmem:[#allocation2 + $0x8] sm:$0xff]
        %v657 = vld [vmem:[#allocation2 + $0x10] sm:$0xff]
        %v658 = vld [vmem:[#allocation2 + $0x18] sm:$0xff]
        %v659 = vld [vmem:[#allocation2 + $0x20] sm:$0xff]
        %v660 = vld [vmem:[#allocation2 + $0x28] sm:$0xff]
        %v661 = vld [vmem:[#allocation2 + $0x30] sm:$0xff]
        %v662 = vld [vmem:[#allocation2 + $0x38] sm:$0xff]
        %v663 = vld [vmem:[#allocation2 + $0x40] sm:$0xff]
        %v664 = vld [vmem:[#allocation2 + $0x48] sm:$0xff]
        %v665 = vld [vmem:[#allocation2 + $0x50] sm:$0xff]
        %v666 = vld [vmem:[#allocation2 + $0x58] sm:$0xff]
        %v667 = vld [vmem:[#allocation2 + $0x60] sm:$0xff]
        %v668 = vld [vmem:[#allocation2 + $0x68] sm:$0xff]
        %v669 = vld [vmem:[#allocation2 + $0x70] sm:$0xff]
        %v670 = vld [vmem:[#allocation2 + $0x78] sm:$0xff]
        %v671 = vld [vmem:[#allocation2 + $0x80] sm:$0xff]
        %v672 = vld [vmem:[#allocation2 + $0x88] sm:$0xff]
        %v673 = vld [vmem:[#allocation2 + $0x90] sm:$0xff]
        %v674 = vld [vmem:[#allocation2 + $0x98] sm:$0xff]
        %v675 = vld [vmem:[#allocation2 + $0xa0] sm:$0xff]
        %v676 = vld [vmem:[#allocation2 + $0xa8] sm:$0xff]
        %v677 = vld [vmem:[#allocation2 + $0xb0] sm:$0xff]
        %v678 = vld [vmem:[#allocation2 + $0xb8] sm:$0xff]
        %v679 = vld [vmem:[#allocation2 + $0xc0] sm:$0xff]
        %v680 = vld [vmem:[#allocation2 + $0xc8] sm:$0xff]
        %v681 = vld [vmem:[#allocation2 + $0xd0] sm:$0xff]
        %v682 = vld [vmem:[#allocation2 + $0xd8] sm:$0xff]
        %v683 = vld [vmem:[#allocation2 + $0xe0] sm:$0xff]
        %v684 = vld [vmem:[#allocation2 + $0xe8] sm:$0xff]
        %v685 = vld [vmem:[#allocation2 + $0xf0] sm:$0xff]
        %v686 = vld [vmem:[#allocation2 + $0xf8] sm:$0xff]
        %v687 = vpack.c.bf16 %v655, %v655
        %v688 = vpack.c.bf16 %v656, %v656
        %v689 = vpack.c.bf16 %v657, %v657
        %v690 = vpack.c.bf16 %v658, %v658
        %v691 = vpack.c.bf16 %v659, %v659
        %v692 = vpack.c.bf16 %v660, %v660
        %v693 = vpack.c.bf16 %v661, %v661
        %v694 = vpack.c.bf16 %v662, %v662
        %v695 = vpack.c.bf16 %v663, %v663
        %v696 = vpack.c.bf16 %v664, %v664
        %v697 = vpack.c.bf16 %v665, %v665
        %v698 = vpack.c.bf16 %v666, %v666
        %v699 = vpack.c.bf16 %v667, %v667
        %v700 = vpack.c.bf16 %v668, %v668
        %v701 = vpack.c.bf16 %v669, %v669
        %v702 = vpack.c.bf16 %v670, %v670
        %v703 = vpack.c.bf16 %v671, %v671
        %v704 = vpack.c.bf16 %v672, %v672
        %v705 = vpack.c.bf16 %v673, %v673
        %v706 = vpack.c.bf16 %v674, %v674
        %v707 = vpack.c.bf16 %v675, %v675
        %v708 = vpack.c.bf16 %v676, %v676
        %v709 = vpack.c.bf16 %v677, %v677
        %v710 = vpack.c.bf16 %v678, %v678
        %v711 = vpack.c.bf16 %v679, %v679
        %v712 = vpack.c.bf16 %v680, %v680
        %v713 = vpack.c.bf16 %v681, %v681
        %v714 = vpack.c.bf16 %v682, %v682
        %v715 = vpack.c.bf16 %v683, %v683
        %v716 = vpack.c.bf16 %v684, %v684
        %v717 = vpack.c.bf16 %v685, %v685
        %v718 = vpack.c.bf16 %v686, %v686
        %719 = vst [vmem:[%s235] sm:$0xf] %v687
        %720 = vst [vmem:[%s235 + $0x4] sm:$0xf] %v688
        %721 = vst [vmem:[%s235 + $0x8] sm:$0xf] %v689
        %722 = vst [vmem:[%s235 + $0xc] sm:$0xf] %v690
        %723 = vst [vmem:[%s235 + $0x10] sm:$0xf] %v691
        %724 = vst [vmem:[%s235 + $0x14] sm:$0xf] %v692
        %725 = vst [vmem:[%s235 + $0x18] sm:$0xf] %v693
        %726 = vst [vmem:[%s235 + $0x1c] sm:$0xf] %v694
        %727 = vst [vmem:[%s235 + $0x20] sm:$0xf] %v695
        %728 = vst [vmem:[%s235 + $0x24] sm:$0xf] %v696
        %729 = vst [vmem:[%s235 + $0x28] sm:$0xf] %v697
        %730 = vst [vmem:[%s235 + $0x2c] sm:$0xf] %v698
        %731 = vst [vmem:[%s235 + $0x30] sm:$0xf] %v699
        %732 = vst [vmem:[%s235 + $0x34] sm:$0xf] %v700
        %733 = vst [vmem:[%s235 + $0x38] sm:$0xf] %v701
        %734 = vst [vmem:[%s235 + $0x3c] sm:$0xf] %v702
        %735 = vst [vmem:[%s235 + $0x40] sm:$0xf] %v703
        %736 = vst [vmem:[%s235 + $0x44] sm:$0xf] %v704
        %737 = vst [vmem:[%s235 + $0x48] sm:$0xf] %v705
        %738 = vst [vmem:[%s235 + $0x4c] sm:$0xf] %v706
        %739 = vst [vmem:[%s235 + $0x50] sm:$0xf] %v707
        %740 = vst [vmem:[%s235 + $0x54] sm:$0xf] %v708
        %741 = vst [vmem:[%s235 + $0x58] sm:$0xf] %v709
        %742 = vst [vmem:[%s235 + $0x5c] sm:$0xf] %v710
        %743 = vst [vmem:[%s235 + $0x60] sm:$0xf] %v711
        %744 = vst [vmem:[%s235 + $0x64] sm:$0xf] %v712
        %745 = vst [vmem:[%s235 + $0x68] sm:$0xf] %v713
        %746 = vst [vmem:[%s235 + $0x6c] sm:$0xf] %v714
        %747 = vst [vmem:[%s235 + $0x70] sm:$0xf] %v715
        %748 = vst [vmem:[%s235 + $0x74] sm:$0xf] %v716
        %749 = vst [vmem:[%s235 + $0x78] sm:$0xf] %v717
        %750 = vst [vmem:[%s235 + $0x7c] sm:$0xf] %v718
        %v751 = vadd.f32 %v655, %v656
        %v752 = vadd.f32 %v751, %v657
        %v753 = vadd.f32 %v752, %v658
        %v754 = vadd.f32 %v753, %v659
        %v755 = vadd.f32 %v754, %v660
        %v756 = vadd.f32 %v755, %v661
        %v757 = vadd.f32 %v756, %v662
        %v758 = vadd.f32 %v757, %v663
        %v759 = vadd.f32 %v758, %v664
        %v760 = vadd.f32 %v759, %v665
        %v761 = vadd.f32 %v760, %v666
        %v762 = vadd.f32 %v761, %v667
        %v763 = vadd.f32 %v762, %v668
        %v764 = vadd.f32 %v763, %v669
        %v765 = vadd.f32 %v764, %v670
        %v766 = vadd.f32 %v765, %v671
        %v767 = vadd.f32 %v766, %v672
        %v768 = vadd.f32 %v767, %v673
        %v769 = vadd.f32 %v768, %v674
        %v770 = vadd.f32 %v769, %v675
        %v771 = vadd.f32 %v770, %v676
        %v772 = vadd.f32 %v771, %v677
        %v773 = vadd.f32 %v772, %v678
        %v774 = vadd.f32 %v773, %v679
        %v775 = vadd.f32 %v774, %v680
        %v776 = vadd.f32 %v775, %v681
        %v777 = vadd.f32 %v776, %v682
        %v778 = vadd.f32 %v777, %v683
        %v779 = vadd.f32 %v778, %v684
        %v780 = vadd.f32 %v779, %v685
        %v781 = vadd.f32 %v780, %v686
        %v782 = vrot.slane %v781, 4
        %v783 = vadd.f32 %v781, %v782
        %v784 = vrot.slane %v783, 2
        %v785 = vadd.f32 %v783, %v784
        %v786 = vrot.slane %v785, 1
        %v787 = vadd.f32 %v785, %v786
        %v788 = vmul.f32 %v655, %v655
        %v789 = vmul.f32 %v656, %v656
        %v790 = vmul.f32 %v657, %v657
        %v791 = vmul.f32 %v658, %v658
        %v792 = vmul.f32 %v659, %v659
        %v793 = vmul.f32 %v660, %v660
        %v794 = vmul.f32 %v661, %v661
        %v795 = vmul.f32 %v662, %v662
        %v796 = vmul.f32 %v663, %v663
        %v797 = vmul.f32 %v664, %v664
        %v798 = vmul.f32 %v665, %v665
        %v799 = vmul.f32 %v666, %v666
        %v800 = vmul.f32 %v667, %v667
        %v801 = vmul.f32 %v668, %v668
        %v802 = vmul.f32 %v669, %v669
        %v803 = vmul.f32 %v670, %v670
        %v804 = vmul.f32 %v671, %v671
        %v805 = vmul.f32 %v672, %v672
        %v806 = vmul.f32 %v673, %v673
        %v807 = vmul.f32 %v674, %v674
        %v808 = vmul.f32 %v675, %v675
        %v809 = vmul.f32 %v676, %v676
        %v810 = vmul.f32 %v677, %v677
        %v811 = vmul.f32 %v678, %v678
        %v812 = vmul.f32 %v679, %v679
        %v813 = vmul.f32 %v680, %v680
        %v814 = vmul.f32 %v681, %v681
        %v815 = vmul.f32 %v682, %v682
        %v816 = vmul.f32 %v683, %v683
        %v817 = vmul.f32 %v684, %v684
        %v818 = vmul.f32 %v685, %v685
        %v819 = vmul.f32 %v686, %v686
        %v820 = vadd.f32 %v788, %v789
        %v821 = vadd.f32 %v820, %v790
        %v822 = vadd.f32 %v821, %v791
        %v823 = vadd.f32 %v822, %v792
        %v824 = vadd.f32 %v823, %v793
        %v825 = vadd.f32 %v824, %v794
        %v826 = vadd.f32 %v825, %v795
        %v827 = vadd.f32 %v826, %v796
        %v828 = vadd.f32 %v827, %v797
        %v829 = vadd.f32 %v828, %v798
        %v830 = vadd.f32 %v829, %v799
        %v831 = vadd.f32 %v830, %v800
        %v832 = vadd.f32 %v831, %v801
        %v833 = vadd.f32 %v832, %v802
        %v834 = vadd.f32 %v833, %v803
        %v835 = vadd.f32 %v834, %v804
        %v836 = vadd.f32 %v835, %v805
        %v837 = vadd.f32 %v836, %v806
        %v838 = vadd.f32 %v837, %v807
        %v839 = vadd.f32 %v838, %v808
        %v840 = vadd.f32 %v839, %v809
        %v841 = vadd.f32 %v840, %v810
        %v842 = vadd.f32 %v841, %v811
        %v843 = vadd.f32 %v842, %v812
        %v844 = vadd.f32 %v843, %v813
        %v845 = vadd.f32 %v844, %v814
        %v846 = vadd.f32 %v845, %v815
        %v847 = vadd.f32 %v846, %v816
        %v848 = vadd.f32 %v847, %v817
        %v849 = vadd.f32 %v848, %v818
        %v850 = vadd.f32 %v849, %v819
        %v851 = vrot.slane %v850, 4
        %v852 = vadd.f32 %v850, %v851
        %v853 = vrot.slane %v852, 2
        %v854 = vadd.f32 %v852, %v853
        %v855 = vrot.slane %v854, 1
        %v856 = vadd.f32 %v854, %v855
        %857 = vst [vmem:[%s240] sm:$0xff] %v787
        %858 = vst [vmem:[%s244] sm:$0xff] %v856
      $region36: #{conv2d_bn_relu.2} parent=27 // pred_fallthru
        _
      %s859 = smul.u32 32, %s20
      %p860 = scmp.lt.s32.totalorder %s859, 63
      %s861 = scalar_select %p860, %s859, 63
      %s862 = smul.addr %s861, 4
      %s863 = scalar_lea.vmem %s2, %s862
      %p864 = scmp.lt.s32.totalorder %s20, 1
      %s865 = scalar_select %p864, %s20, 1
      %s866 = smul.addr %s865, 8
      %s867 = scalar_lea.vmem %s3, %s866
      %p868 = scmp.lt.s32.totalorder %s20, 1
      %s869 = scalar_select %p868, %s20, 1
      %s870 = smul.addr %s869, 8
      %s871 = scalar_lea.vmem %s4, %s870
      // Predicated region
      $region37: #{conv2d_bn_relu.2} parent=27 // pred_check
        %p872 = pneg %p95
      $region38: #{conv2d_bn_relu.2} parent=27 // pred_check_branch
        %874 = sbr.rel (%p872) target = $region40
      $region39: #{conv2d_bn_relu.2} parent=27 // pred_region
        %s875 = smul.u32 32, %s20
      $region40: #{conv2d_bn_relu.2} parent=27 // pred_fallthru
        _
      // Predicated region
      $region41: #{conv2d_bn_relu.2} parent=27 // pred_check
        %p876 = pneg %p121
      $region42: #{conv2d_bn_relu.2} parent=27 // pred_check_branch
        %878 = sbr.rel (%p876) target = $region44
      $region43: #{conv2d_bn_relu.2} parent=27 // pred_region
        _
      $region44: #{conv2d_bn_relu.2} parent=27 // pred_fallthru
        _
      // Predicated region
      $region45: #{conv2d_bn_relu.2} parent=27 // pred_check
        %p879 = pneg %p147
      $region46: #{conv2d_bn_relu.2} parent=27 // pred_check_branch
        %881 = sbr.rel (%p879) target = $region48
      $region47: #{conv2d_bn_relu.2} parent=27 // pred_region
        _
      $region48: #{conv2d_bn_relu.2} parent=27 // pred_fallthru
        _
    $region28: #{conv2d_bn_relu.2} parent=5 // pred_fallthru
      _
    %p882 = scmp.le.s32.totalorder 2, %s11
    // Predicated region
    $region49: #{conv2d_bn_relu.2} parent=5 // pred_check
      %p883 = pneg %p882
    $region50: #{conv2d_bn_relu.2} parent=5 // pred_check_branch
      %885 = sbr.rel (%p883) target = $region52
    $region51: #{conv2d_bn_relu.2} parent=5 // pred_region
      %s886 = ssub.s32 %s11, 2
      // Predicated region
      $region53: #{conv2d_bn_relu.2} parent=51 // pred_check
        %p887 = pneg %p101
      $region54: #{conv2d_bn_relu.2} parent=51 // pred_check_branch
        %889 = sbr.rel (%p887) target = $region56
      $region55: #{conv2d_bn_relu.2} parent=51 // pred_region
        %s890 = smul.u32 32, %s22
        %p891 = scmp.lt.s32.totalorder %s890, 63
        %s892 = scalar_select %p891, %s890, 63
        %s893 = smul.addr %s892, 4
        %s894 = scalar_lea.vmem %s2, %s893
      $region56: #{conv2d_bn_relu.2} parent=51 // pred_fallthru
        _
      // Predicated region
      $region57: #{conv2d_bn_relu.2} parent=51 // pred_check
        %p895 = pneg %p127
      $region58: #{conv2d_bn_relu.2} parent=51 // pred_check_branch
        %897 = sbr.rel (%p895) target = $region60
      $region59: #{conv2d_bn_relu.2} parent=51 // pred_region
        %p898 = scmp.lt.s32.totalorder %s22, 1
        %s899 = scalar_select %p898, %s22, 1
        %s900 = smul.addr %s899, 8
        %s901 = scalar_lea.vmem %s3, %s900
      $region60: #{conv2d_bn_relu.2} parent=51 // pred_fallthru
        _
      // Predicated region
      $region61: #{conv2d_bn_relu.2} parent=51 // pred_check
        %p902 = pneg %p153
      $region62: #{conv2d_bn_relu.2} parent=51 // pred_check_branch
        %904 = sbr.rel (%p902) target = $region64
      $region63: #{conv2d_bn_relu.2} parent=51 // pred_region
        %p905 = scmp.lt.s32.totalorder %s22, 1
        %s906 = scalar_select %p905, %s22, 1
        %s907 = smul.addr %s906, 8
        %s908 = scalar_lea.vmem %s4, %s907
      $region64: #{conv2d_bn_relu.2} parent=51 // pred_fallthru
        _
    $region52: #{conv2d_bn_relu.2} parent=5 // pred_fallthru
      _
  $region6: #{conv2d_bn_relu.2} parent=0 // loop_footer
    %s15 = sadd.s32 1, %s11
  $region7: #{conv2d_bn_relu.2} parent=0 // loop_footer_branch
    %10 = sbr.rel target = $region3
  $region8: #{conv2d_bn_relu.2} parent=0 // loop_exit
    _

</llo_original>
